<compile_context>
chip_gen: v5e
topology: v5e:2x2
jax: 0.10.0
libtpu: 0.0.40
codegen_flags: <defaults>
</compile_context>

<pallas_src>
import jax
import jax.numpy as jnp
from jax.experimental import pallas as pl
from jax.experimental.pallas import tpu as pltpu


# Encoder: input_dim -> 512 -> 256 -> 128 -> 64 -> latent_dim
# Decoder: latent_dim -> 64 -> 128 -> 256 -> 512 -> input_dim
def _layer_dims(input_dim, latent_dim):
    enc = [input_dim, 512, 256, 128, 64, latent_dim]
    dec = [latent_dim, 64, 128, 256, 512, input_dim]
    return list(zip(enc[:-1], enc[1:])) + list(zip(dec[:-1], dec[1:]))


def _round_up(a, b):
    return (a + b - 1) // b * b


def _choose_tb(batch, tb_max=512):
    """Pick the batch tile size.

    - multiple of 8 (f32 sublanes), capped at tb_max (vreg pressure of the
      (TB, 512) f32 accumulator).
    - guarantee >= 2 grid steps whenever batch allows it, so
      dimension_semantics=("parallel",) can shard tiles across v7x's 2 TCs.
    - among large candidates, minimize pad waste; tie-break on the larger
      tile (better MXU M-occupancy, fewer per-step grid overheads).
    """
    b8 = _round_up(batch, 8)
    if b8 <= 8:
        return b8
    cap = min(tb_max, (b8 // 2) // 8 * 8)       # >= 8, guarantees >= 2 steps
    big = [tb for tb in (512, 384, 256, 128) if tb <= cap]
    if big:
        return min(big, key=lambda tb: (_round_up(b8, tb) - b8, -tb))
    return cap


def autoencoder_kernel(x_ref, bias_ref, *rest):
    """rest = (w0, ..., w8, out_ref). ReLU after every layer except the last.

    Layers (after host-side fusion):
      0: input->512   (scale_in folded)      ... ReLU
      1..3: 512->256->128->64                ... ReLU
      4: 64->64 (collapsed latent pair)      ... ReLU
      5..7: 64->128->256->512                ... ReLU
      8: 512->input   (scale_out folded)     ... no ReLU
    """
    w_refs = rest[:-1]
    out_ref = rest[-1]
    n_layers = len(w_refs)

    h = x_ref[...].astype(jnp.bfloat16)              # bf16 MXU operand
    for i in range(n_layers):
        w = w_refs[i][...]                           # (in, out) bf16, VMEM-resident
        out_dim = w.shape[1]
        b = bias_ref[i:i + 1, 0:out_dim]             # (1, out) f32, static slice
        acc = jnp.dot(h, w, preferred_element_type=jnp.float32)   # f32 accumulate
        if i != n_layers - 1:
            # Fused bias-add + ReLU + bf16 downcast (single expression: keeps
            # the f32 intermediate live only briefly; elementwise math in f32).
            h = jnp.maximum(acc + b, 0.0).astype(jnp.bfloat16)
        else:
            out_ref[...] = acc + b                   # scale_out already folded in


def _fuse_params(mu_in, sig_in, weights, biases):
    """Fold scale_in/scale_out into the edge Linear layers and collapse the
    ReLU-free latent pair into one 64x64 layer.  All composition in f32;
    the bf16 cast happens last (in the caller)."""
    mu = jnp.asarray(mu_in, jnp.float32).reshape(-1)
    sig = jnp.asarray(sig_in, jnp.float32).reshape(-1)
    ws = [jnp.asarray(w, jnp.float32) for w in weights]
    bs = [jnp.asarray(b, jnp.float32) for b in biases]
    n = len(ws)
    i_enc, i_dec = n // 2 - 1, n // 2                # the two latent layers

    inv_sig = 1.0 / sig                              # matches PyTorch semantics (no eps)
    w_first = ws[0] * inv_sig[:, None]               # scale_in fold
    b_first = bs[0] - (mu * inv_sig) @ ws[0]

    w_lat = ws[i_enc] @ ws[i_dec]                    # latent collapse (exact affine)
    b_lat = bs[i_enc] @ ws[i_dec] + bs[i_dec]

    w_last = ws[-1] * sig[None, :]                   # scale_out fold
    b_last = bs[-1] * sig + mu

    fw = [w_first] + ws[1:i_enc] + [w_lat] + ws[i_dec + 1:-1] + [w_last]
    fb = [b_first] + bs[1:i_enc] + [b_lat] + bs[i_dec + 1:-1] + [b_last]
    return fw, fb


def scaled_autoencoder_forward(x, mu_in, sig_in, weights, biases, *, tb_max=512):
    """x: (B, input_dim). weights[i]: (in, out) [y = x @ W + b]. biases[i]: (out,)."""
    B, input_dim = x.shape
    x = x.astype(jnp.float32)

    fw, fb = _fuse_params(mu_in, sig_in, weights, biases)
    n_layers = len(fw)
    w_bf16 = [w.astype(jnp.bfloat16) for w in fw]

    # Packed biases: (n_layers, max_out) f32, zero padded per row.
    max_out = max(w.shape[1] for w in fw)
    bias_pack = jnp.zeros((n_layers, max_out), jnp.float32)
    for i, b in enumerate(fb):
        bias_pack = bias_pack.at[i, : b.shape[0]].set(b)

    # Batch tiling.
    TB = _choose_tb(B, tb_max)
    B_pad = _round_up(B, TB)
    if B_pad != B:
        x = jnp.pad(x, ((0, B_pad - B), (0, 0)))
    grid = (B_pad // TB,)

    def const_spec(arr):
        # Full-array block, constant index -> stays VMEM-resident across steps.
        return pl.BlockSpec(arr.shape, lambda i: (0, 0))

    in_specs = [
        pl.BlockSpec((TB, input_dim), lambda i: (i, 0)),   # x tile
        const_spec(bias_pack),
    ] + [const_spec(w) for w in w_bf16]

    flops = 2 * B_pad * sum(w.shape[0] * w.shape[1] for w in fw)
    bytes_accessed = (x.size * 4                     # input
                      + B_pad * input_dim * 4        # output
                      + sum(w.size * 2 for w in w_bf16)
                      + bias_pack.size * 4)

    fn = pl.pallas_call(
        autoencoder_kernel,
        out_shape=jax.ShapeDtypeStruct((B_pad, input_dim), jnp.float32),
        grid=grid,
        in_specs=in_specs,
        out_specs=pl.BlockSpec((TB, input_dim), lambda i: (i, 0)),
        compiler_params=pltpu.CompilerParams(
            dimension_semantics=("parallel",),
            vmem_limit_bytes=16 << 20,
        ),
        cost_estimate=pl.CostEstimate(
            flops=int(flops), transcendentals=0, bytes_accessed=int(bytes_accessed)),
    )
    out = fn(x, bias_pack, *w_bf16)
    return out[:B]


def _reference_forward(x, mu_in, sig_in, weights, biases):
    """Faithful f32 implementation of the PyTorch module (no fusion, no bf16)."""
    mu = jnp.asarray(mu_in, jnp.float32).reshape(1, -1)
    sig = jnp.asarray(sig_in, jnp.float32).reshape(1, -1)
    h = (x.astype(jnp.float32) - mu) / sig
    n = len(weights)
    for i, (w, b) in enumerate(zip(weights, biases)):
        h = h @ w + b.reshape(1, -1)
        if i != n // 2 - 1 and i != n - 1:     # no ReLU on latent / final layer
            h = jnp.maximum(h, 0.0)
    return h * sig + mu


if __name__ == "__main__":
    # Small, deterministic synthetic problem.
    B = 16
    input_dim = 256
    latent_dim = 16

    key = jax.random.PRNGKey(0)
    key, kx, kmu, ksig = jax.random.split(key, 4)

    x = jax.random.normal(kx, (B, input_dim), dtype=jnp.float32)
    mu_in = jax.random.normal(kmu, (input_dim,), dtype=jnp.float32) * 0.1
    sig_in = jnp.abs(jax.random.normal(ksig, (input_dim,), dtype=jnp.float32)) + 0.5

    weights, biases = [], []
    for (fan_in, fan_out) in _layer_dims(input_dim, latent_dim):
        key, kw, kb = jax.random.split(key, 3)
        scale = 1.0 / jnp.sqrt(jnp.float32(fan_in))
        weights.append(jax.random.normal(kw, (fan_in, fan_out), jnp.float32) * scale)
        biases.append(jax.random.normal(kb, (fan_out,), jnp.float32) * 0.01)

    out = scaled_autoencoder_forward(x, mu_in, sig_in, weights, biases)
    out = jax.block_until_ready(out)
    assert out.shape == (B, input_dim)

    # Compare against the faithful f32 reference; errors come only from bf16
    # matmul operands (f32 accumulation), so the scaled max error is small.
    ref = _reference_forward(x, mu_in, sig_in, weights, biases)
    scale = jnp.max(jnp.abs(ref)) + 1e-12
    rel_err = float(jnp.max(jnp.abs(out - ref)) / scale)
    assert rel_err < 3e-2, f"max scaled error vs f32 reference too large: {rel_err}"

    print("KERNEL_OK")
</pallas_src>

<mosaic_0001>
module attributes {stable_mosaic.version = 11 : i64} {
  func.func @autoencoder_kernel(%arg0: i32, %arg1: memref<8x256xf32, #tpu.memory_space<vmem>>, %arg2: memref<9x512xf32, #tpu.memory_space<vmem>>, %arg3: memref<256x512xbf16, #tpu.memory_space<vmem>>, %arg4: memref<512x256xbf16, #tpu.memory_space<vmem>>, %arg5: memref<256x128xbf16, #tpu.memory_space<vmem>>, %arg6: memref<128x64xbf16, #tpu.memory_space<vmem>>, %arg7: memref<64x64xbf16, #tpu.memory_space<vmem>>, %arg8: memref<64x128xbf16, #tpu.memory_space<vmem>>, %arg9: memref<128x256xbf16, #tpu.memory_space<vmem>>, %arg10: memref<256x512xbf16, #tpu.memory_space<vmem>>, %arg11: memref<512x256xbf16, #tpu.memory_space<vmem>>, %arg12: memref<8x256xf32, #tpu.memory_space<vmem>>) attributes {dimension_semantics = [#tpu.dimension_semantics<parallel>], iteration_bounds = array<i64: 2>, scalar_prefetch = 0 : i64, scratch_operands = 0 : i64, tpu.core_type = #tpu.core_type<tc>, window_params = [{transform_indices = @transform_0, window_bounds = array<i64: 8, 256>}, {pipeline_mode = #tpu.pipeline_mode<synchronous>, transform_indices = @transform_1, window_bounds = array<i64: 9, 512>}, {pipeline_mode = #tpu.pipeline_mode<synchronous>, transform_indices = @transform_2, window_bounds = array<i64: 256, 512>}, {pipeline_mode = #tpu.pipeline_mode<synchronous>, transform_indices = @transform_3, window_bounds = array<i64: 512, 256>}, {pipeline_mode = #tpu.pipeline_mode<synchronous>, transform_indices = @transform_4, window_bounds = array<i64: 256, 128>}, {pipeline_mode = #tpu.pipeline_mode<synchronous>, transform_indices = @transform_5, window_bounds = array<i64: 128, 64>}, {pipeline_mode = #tpu.pipeline_mode<synchronous>, transform_indices = @transform_6, window_bounds = array<i64: 64, 64>}, {pipeline_mode = #tpu.pipeline_mode<synchronous>, transform_indices = @transform_7, window_bounds = array<i64: 64, 128>}, {pipeline_mode = #tpu.pipeline_mode<synchronous>, transform_indices = @transform_8, window_bounds = array<i64: 128, 256>}, {pipeline_mode = #tpu.pipeline_mode<synchronous>, transform_indices = @transform_9, window_bounds = array<i64: 256, 512>}, {pipeline_mode = #tpu.pipeline_mode<synchronous>, transform_indices = @transform_10, window_bounds = array<i64: 512, 256>}, {transform_indices = @transform_11, window_bounds = array<i64: 8, 256>}]} {
    %c0 = arith.constant 0 : index
    %c0_0 = arith.constant 0 : index
    %0 = vector.load %arg1[%c0, %c0_0] : memref<8x256xf32, #tpu.memory_space<vmem>>, vector<8x256xf32>
    %1 = arith.truncf %0 : vector<8x256xf32> to vector<8x256xbf16>
    %c0_1 = arith.constant 0 : index
    %c0_2 = arith.constant 0 : index
    %2 = vector.load %arg3[%c0_1, %c0_2] : memref<256x512xbf16, #tpu.memory_space<vmem>>, vector<256x512xbf16>
    %c0_3 = arith.constant 0 : index
    %c0_4 = arith.constant 0 : index
    %3 = vector.load %arg2[%c0_3, %c0_4] : memref<9x512xf32, #tpu.memory_space<vmem>>, vector<1x512xf32>
    %cst = arith.constant dense<0.000000e+00> : vector<8x512xf32>
    %4 = tpu.matmul %1, %2, %cst {dimension_numbers = #tpu.dot_dimension_numbers<[1], [0], [0], [1], [0, 0, 1, 1], [], []>} : vector<8x256xbf16>, vector<256x512xbf16>, vector<8x512xf32> -> vector<8x512xf32>
    %5 = vector.broadcast %3 : vector<1x512xf32> to vector<8x512xf32>
    %6 = arith.addf %4, %5 : vector<8x512xf32>
    %cst_5 = arith.constant 0.000000e+00 : f32
    %7 = vector.broadcast %cst_5 : f32 to vector<8x512xf32>
    %8 = arith.maximumf %6, %7 : vector<8x512xf32>
    %9 = arith.truncf %8 : vector<8x512xf32> to vector<8x512xbf16>
    %c0_6 = arith.constant 0 : index
    %c0_7 = arith.constant 0 : index
    %10 = vector.load %arg4[%c0_6, %c0_7] : memref<512x256xbf16, #tpu.memory_space<vmem>>, vector<512x256xbf16>
    %c1 = arith.constant 1 : index
    %c0_8 = arith.constant 0 : index
    %11 = vector.load %arg2[%c1, %c0_8] : memref<9x512xf32, #tpu.memory_space<vmem>>, vector<1x256xf32>
    %cst_9 = arith.constant dense<0.000000e+00> : vector<8x256xf32>
    %12 = tpu.matmul %9, %10, %cst_9 {dimension_numbers = #tpu.dot_dimension_numbers<[1], [0], [0], [1], [0, 0, 1, 1], [], []>} : vector<8x512xbf16>, vector<512x256xbf16>, vector<8x256xf32> -> vector<8x256xf32>
    %13 = vector.broadcast %11 : vector<1x256xf32> to vector<8x256xf32>
    %14 = arith.addf %12, %13 : vector<8x256xf32>
    %cst_10 = arith.constant 0.000000e+00 : f32
    %15 = vector.broadcast %cst_10 : f32 to vector<8x256xf32>
    %16 = arith.maximumf %14, %15 : vector<8x256xf32>
    %17 = arith.truncf %16 : vector<8x256xf32> to vector<8x256xbf16>
    %c0_11 = arith.constant 0 : index
    %c0_12 = arith.constant 0 : index
    %18 = vector.load %arg5[%c0_11, %c0_12] : memref<256x128xbf16, #tpu.memory_space<vmem>>, vector<256x128xbf16>
    %c2 = arith.constant 2 : index
    %c0_13 = arith.constant 0 : index
    %19 = vector.load %arg2[%c2, %c0_13] : memref<9x512xf32, #tpu.memory_space<vmem>>, vector<1x128xf32>
    %cst_14 = arith.constant dense<0.000000e+00> : vector<8x128xf32>
    %20 = tpu.matmul %17, %18, %cst_14 {dimension_numbers = #tpu.dot_dimension_numbers<[1], [0], [0], [1], [0, 0, 1, 1], [], []>} : vector<8x256xbf16>, vector<256x128xbf16>, vector<8x128xf32> -> vector<8x128xf32>
    %21 = vector.broadcast %19 : vector<1x128xf32> to vector<8x128xf32>
    %22 = arith.addf %20, %21 : vector<8x128xf32>
    %cst_15 = arith.constant 0.000000e+00 : f32
    %23 = vector.broadcast %cst_15 : f32 to vector<8x128xf32>
    %24 = arith.maximumf %22, %23 : vector<8x128xf32>
    %25 = arith.truncf %24 : vector<8x128xf32> to vector<8x128xbf16>
    %c0_16 = arith.constant 0 : index
    %c0_17 = arith.constant 0 : index
    %26 = vector.load %arg6[%c0_16, %c0_17] : memref<128x64xbf16, #tpu.memory_space<vmem>>, vector<128x64xbf16>
    %c3 = arith.constant 3 : index
    %c0_18 = arith.constant 0 : index
    %27 = vector.load %arg2[%c3, %c0_18] : memref<9x512xf32, #tpu.memory_space<vmem>>, vector<1x64xf32>
    %cst_19 = arith.constant dense<0.000000e+00> : vector<8x64xf32>
    %28 = tpu.matmul %25, %26, %cst_19 {dimension_numbers = #tpu.dot_dimension_numbers<[1], [0], [0], [1], [0, 0, 1, 1], [], []>} : vector<8x128xbf16>, vector<128x64xbf16>, vector<8x64xf32> -> vector<8x64xf32>
    %29 = vector.broadcast %27 : vector<1x64xf32> to vector<8x64xf32>
    %30 = arith.addf %28, %29 : vector<8x64xf32>
    %cst_20 = arith.constant 0.000000e+00 : f32
    %31 = vector.broadcast %cst_20 : f32 to vector<8x64xf32>
    %32 = arith.maximumf %30, %31 : vector<8x64xf32>
    %33 = arith.truncf %32 : vector<8x64xf32> to vector<8x64xbf16>
    %c0_21 = arith.constant 0 : index
    %c0_22 = arith.constant 0 : index
    %34 = vector.load %arg7[%c0_21, %c0_22] : memref<64x64xbf16, #tpu.memory_space<vmem>>, vector<64x64xbf16>
    %c4 = arith.constant 4 : index
    %c0_23 = arith.constant 0 : index
    %35 = vector.load %arg2[%c4, %c0_23] : memref<9x512xf32, #tpu.memory_space<vmem>>, vector<1x64xf32>
    %cst_24 = arith.constant dense<0.000000e+00> : vector<8x64xf32>
    %36 = tpu.matmul %33, %34, %cst_24 {dimension_numbers = #tpu.dot_dimension_numbers<[1], [0], [0], [1], [0, 0, 1, 1], [], []>} : vector<8x64xbf16>, vector<64x64xbf16>, vector<8x64xf32> -> vector<8x64xf32>
    %37 = vector.broadcast %35 : vector<1x64xf32> to vector<8x64xf32>
    %38 = arith.addf %36, %37 : vector<8x64xf32>
    %cst_25 = arith.constant 0.000000e+00 : f32
    %39 = vector.broadcast %cst_25 : f32 to vector<8x64xf32>
    %40 = arith.maximumf %38, %39 : vector<8x64xf32>
    %41 = arith.truncf %40 : vector<8x64xf32> to vector<8x64xbf16>
    %c0_26 = arith.constant 0 : index
    %c0_27 = arith.constant 0 : index
    %42 = vector.load %arg8[%c0_26, %c0_27] : memref<64x128xbf16, #tpu.memory_space<vmem>>, vector<64x128xbf16>
    %c5 = arith.constant 5 : index
    %c0_28 = arith.constant 0 : index
    %43 = vector.load %arg2[%c5, %c0_28] : memref<9x512xf32, #tpu.memory_space<vmem>>, vector<1x128xf32>
    %cst_29 = arith.constant dense<0.000000e+00> : vector<8x128xf32>
    %44 = tpu.matmul %41, %42, %cst_29 {dimension_numbers = #tpu.dot_dimension_numbers<[1], [0], [0], [1], [0, 0, 1, 1], [], []>} : vector<8x64xbf16>, vector<64x128xbf16>, vector<8x128xf32> -> vector<8x128xf32>
    %45 = vector.broadcast %43 : vector<1x128xf32> to vector<8x128xf32>
    %46 = arith.addf %44, %45 : vector<8x128xf32>
    %cst_30 = arith.constant 0.000000e+00 : f32
    %47 = vector.broadcast %cst_30 : f32 to vector<8x128xf32>
    %48 = arith.maximumf %46, %47 : vector<8x128xf32>
    %49 = arith.truncf %48 : vector<8x128xf32> to vector<8x128xbf16>
    %c0_31 = arith.constant 0 : index
    %c0_32 = arith.constant 0 : index
    %50 = vector.load %arg9[%c0_31, %c0_32] : memref<128x256xbf16, #tpu.memory_space<vmem>>, vector<128x256xbf16>
    %c6 = arith.constant 6 : index
    %c0_33 = arith.constant 0 : index
    %51 = vector.load %arg2[%c6, %c0_33] : memref<9x512xf32, #tpu.memory_space<vmem>>, vector<1x256xf32>
    %cst_34 = arith.constant dense<0.000000e+00> : vector<8x256xf32>
    %52 = tpu.matmul %49, %50, %cst_34 {dimension_numbers = #tpu.dot_dimension_numbers<[1], [0], [0], [1], [0, 0, 1, 1], [], []>} : vector<8x128xbf16>, vector<128x256xbf16>, vector<8x256xf32> -> vector<8x256xf32>
    %53 = vector.broadcast %51 : vector<1x256xf32> to vector<8x256xf32>
    %54 = arith.addf %52, %53 : vector<8x256xf32>
    %cst_35 = arith.constant 0.000000e+00 : f32
    %55 = vector.broadcast %cst_35 : f32 to vector<8x256xf32>
    %56 = arith.maximumf %54, %55 : vector<8x256xf32>
    %57 = arith.truncf %56 : vector<8x256xf32> to vector<8x256xbf16>
    %c0_36 = arith.constant 0 : index
    %c0_37 = arith.constant 0 : index
    %58 = vector.load %arg10[%c0_36, %c0_37] : memref<256x512xbf16, #tpu.memory_space<vmem>>, vector<256x512xbf16>
    %c7 = arith.constant 7 : index
    %c0_38 = arith.constant 0 : index
    %59 = vector.load %arg2[%c7, %c0_38] : memref<9x512xf32, #tpu.memory_space<vmem>>, vector<1x512xf32>
    %cst_39 = arith.constant dense<0.000000e+00> : vector<8x512xf32>
    %60 = tpu.matmul %57, %58, %cst_39 {dimension_numbers = #tpu.dot_dimension_numbers<[1], [0], [0], [1], [0, 0, 1, 1], [], []>} : vector<8x256xbf16>, vector<256x512xbf16>, vector<8x512xf32> -> vector<8x512xf32>
    %61 = vector.broadcast %59 : vector<1x512xf32> to vector<8x512xf32>
    %62 = arith.addf %60, %61 : vector<8x512xf32>
    %cst_40 = arith.constant 0.000000e+00 : f32
    %63 = vector.broadcast %cst_40 : f32 to vector<8x512xf32>
    %64 = arith.maximumf %62, %63 : vector<8x512xf32>
    %65 = arith.truncf %64 : vector<8x512xf32> to vector<8x512xbf16>
    %c0_41 = arith.constant 0 : index
    %c0_42 = arith.constant 0 : index
    %66 = vector.load %arg11[%c0_41, %c0_42] : memref<512x256xbf16, #tpu.memory_space<vmem>>, vector<512x256xbf16>
    %c8 = arith.constant 8 : index
    %c0_43 = arith.constant 0 : index
    %67 = vector.load %arg2[%c8, %c0_43] : memref<9x512xf32, #tpu.memory_space<vmem>>, vector<1x256xf32>
    %cst_44 = arith.constant dense<0.000000e+00> : vector<8x256xf32>
    %68 = tpu.matmul %65, %66, %cst_44 {dimension_numbers = #tpu.dot_dimension_numbers<[1], [0], [0], [1], [0, 0, 1, 1], [], []>} : vector<8x512xbf16>, vector<512x256xbf16>, vector<8x256xf32> -> vector<8x256xf32>
    %69 = vector.broadcast %67 : vector<1x256xf32> to vector<8x256xf32>
    %70 = arith.addf %68, %69 : vector<8x256xf32>
    %c0_45 = arith.constant 0 : index
    %c0_46 = arith.constant 0 : index
    %71 = vector.load %arg12[%c0_45, %c0_46] : memref<8x256xf32, #tpu.memory_space<vmem>>, vector<8x256xf32>
    tpu.vector_store %arg12[%c0_45, %c0_46], %70 {strides = array<i32>} : memref<8x256xf32, #tpu.memory_space<vmem>>, vector<8x256xf32>,
    return
  }
  func.func @transform_0(%arg0: i32) -> (i32, i32) {
    %c0_i32 = arith.constant 0 : i32
    %c0_i32_0 = arith.constant 0 : i32
    return %arg0, %c0_i32 : i32, i32
  }
  func.func @transform_1(%arg0: i32) -> (i32, i32) {
    %c0_i32 = arith.constant 0 : i32
    %c0_i32_0 = arith.constant 0 : i32
    %c0_i32_1 = arith.constant 0 : i32
    return %c0_i32, %c0_i32_0 : i32, i32
  }
  func.func @transform_2(%arg0: i32) -> (i32, i32) {
    %c0_i32 = arith.constant 0 : i32
    %c0_i32_0 = arith.constant 0 : i32
    %c0_i32_1 = arith.constant 0 : i32
    return %c0_i32, %c0_i32_0 : i32, i32
  }
  func.func @transform_3(%arg0: i32) -> (i32, i32) {
    %c0_i32 = arith.constant 0 : i32
    %c0_i32_0 = arith.constant 0 : i32
    %c0_i32_1 = arith.constant 0 : i32
    return %c0_i32, %c0_i32_0 : i32, i32
  }
  func.func @transform_4(%arg0: i32) -> (i32, i32) {
    %c0_i32 = arith.constant 0 : i32
    %c0_i32_0 = arith.constant 0 : i32
    %c0_i32_1 = arith.constant 0 : i32
    return %c0_i32, %c0_i32_0 : i32, i32
  }
  func.func @transform_5(%arg0: i32) -> (i32, i32) {
    %c0_i32 = arith.constant 0 : i32
    %c0_i32_0 = arith.constant 0 : i32
    %c0_i32_1 = arith.constant 0 : i32
    return %c0_i32, %c0_i32_0 : i32, i32
  }
  func.func @transform_6(%arg0: i32) -> (i32, i32) {
    %c0_i32 = arith.constant 0 : i32
    %c0_i32_0 = arith.constant 0 : i32
    %c0_i32_1 = arith.constant 0 : i32
    return %c0_i32, %c0_i32_0 : i32, i32
  }
  func.func @transform_7(%arg0: i32) -> (i32, i32) {
    %c0_i32 = arith.constant 0 : i32
    %c0_i32_0 = arith.constant 0 : i32
    %c0_i32_1 = arith.constant 0 : i32
    return %c0_i32, %c0_i32_0 : i32, i32
  }
  func.func @transform_8(%arg0: i32) -> (i32, i32) {
    %c0_i32 = arith.constant 0 : i32
    %c0_i32_0 = arith.constant 0 : i32
    %c0_i32_1 = arith.constant 0 : i32
    return %c0_i32, %c0_i32_0 : i32, i32
  }
  func.func @transform_9(%arg0: i32) -> (i32, i32) {
    %c0_i32 = arith.constant 0 : i32
    %c0_i32_0 = arith.constant 0 : i32
    %c0_i32_1 = arith.constant 0 : i32
    return %c0_i32, %c0_i32_0 : i32, i32
  }
  func.func @transform_10(%arg0: i32) -> (i32, i32) {
    %c0_i32 = arith.constant 0 : i32
    %c0_i32_0 = arith.constant 0 : i32
    %c0_i32_1 = arith.constant 0 : i32
    return %c0_i32, %c0_i32_0 : i32, i32
  }
  func.func @transform_11(%arg0: i32) -> (i32, i32) {
    %c0_i32 = arith.constant 0 : i32
    %c0_i32_0 = arith.constant 0 : i32
    return %arg0, %c0_i32 : i32, i32
  }
}

</mosaic_0001>

<llo_original>
// kernel: tpu_custom_call.1
$region0: #{tpu_custom_call.1}
  #allocation0 [shape = 'u32[]', space=smem, size = 0x4, offset = 0x4, fixed_abs, tag = 'smem constant byte address 0x4 - core index']
  #allocation1 [shape = 'u32[72,128]{1,0:T(1,128)}', space=vmem, size = 0x9000, scoped, tag = 'internal scratch']
  %s0 = inlined_call_operand.vmem [shape: f32[16,256], index: 0, kind: input, shape index: {}]
  %s1 = inlined_call_operand.vmem [shape: f32[9,512], index: 1, kind: input, shape index: {}]
  %s2 = inlined_call_operand.hbm [shape: bf16[256,512], index: 2, kind: input, shape index: {}]
  %s3 = inlined_call_operand.hbm [shape: bf16[512,256], index: 3, kind: input, shape index: {}]
  %s4 = inlined_call_operand.hbm [shape: bf16[256,128], index: 4, kind: input, shape index: {}]
  %s5 = inlined_call_operand.vmem [shape: bf16[128,64], index: 5, kind: input, shape index: {}]
  %s6 = inlined_call_operand.hbm [shape: bf16[64,64], index: 6, kind: input, shape index: {}]
  %s7 = inlined_call_operand.hbm [shape: bf16[64,128], index: 7, kind: input, shape index: {}]
  %s8 = inlined_call_operand.hbm [shape: bf16[128,256], index: 8, kind: input, shape index: {}]
  %s9 = inlined_call_operand.hbm [shape: bf16[256,512], index: 9, kind: input, shape index: {}]
  %s10 = inlined_call_operand.hbm [shape: bf16[512,256], index: 10, kind: input, shape index: {}]
  %s11 = inlined_call_operand.hbm [shape: f32[16,256], index: 11, kind: output, shape index: {}]
  %s12 = sld [smem:[#allocation0]]
  $region109: #{tpu_custom_call.1} parent=0
    _
  %s14 = ssub.s32 1, %s12
  %s15 = scalar_select 0, %s14, %s12
  $region1: #{tpu_custom_call.1} parent=0
    #allocation2 [shape = 'u8[262144]{0}', space=vmem, size = 0x40000, scoped, tag = 'input window, operand 2, single buffered']
    #allocation3 [shape = 's32[2]{0}', space=sflag, size = 0x8, scoped, tag = 'scoped memory for tpu_custom_call.1']
    #allocation4 [shape = 's32[2]{0}', space=sflag, size = 0x8, scoped, tag = 'scoped memory for tpu_custom_call.1']
    #allocation5 [shape = 'u8[262144]{0}', space=vmem, size = 0x40000, scoped, tag = 'input window, operand 3, single buffered']
    #allocation6 [shape = 's32[1]{0}', space=sflag, size = 0x4, scoped, tag = 'scoped memory for tpu_custom_call.1']
    #allocation7 [shape = 'u8[65536]{0}', space=vmem, size = 0x10000, scoped, tag = 'input window, operand 4, single buffered']
    #allocation8 [shape = 'u8[16384]{0}', space=vmem, size = 0x4000, scoped, tag = 'input window, operand 6, single buffered']
    #allocation9 [shape = 's32[1]{0}', space=sflag, size = 0x4, scoped, tag = 'scoped memory for tpu_custom_call.1']
    #allocation10 [shape = 'u8[16384]{0}', space=vmem, size = 0x4000, scoped, tag = 'input window, operand 7, single buffered']
    #allocation11 [shape = 'u8[65536]{0}', space=vmem, size = 0x10000, scoped, tag = 'input window, operand 8, single buffered']
    #allocation12 [shape = 's32[1]{0}', space=sflag, size = 0x4, scoped, tag = 'scoped memory for tpu_custom_call.1']
    #allocation13 [shape = 'u8[262144]{0}', space=vmem, size = 0x40000, scoped, tag = 'input window, operand 9, single buffered']
    #allocation14 [shape = 'u8[262144]{0}', space=vmem, size = 0x40000, scoped, tag = 'input window, operand 10, single buffered']
    #allocation15 [shape = 's32[1]{0}', space=sflag, size = 0x4, scoped, tag = 'scoped memory for tpu_custom_call.1']
    #allocation16 [shape = 'u8[16384]{0}', space=vmem, size = 0x4000, scoped, tag = 'output window, operand 0']
    %16 = vsyncpa [#allocation3], 0
    %17 = vsyncpa [#allocation6], 0
    %18 = vsyncpa [#allocation9], 0
    %19 = vsyncpa [#allocation12], 0
    %20 = vsyncpa [#allocation15], 0
    %21 = vsyncpa [#allocation4], 0
    %s22 = scalar_lea.sflag [#allocation4], 1
    %23 = vsyncpa %s22, 0
    loop: start=0, step=1, limit=4
    $region2: #{tpu_custom_call.1} parent=1 // loop_pre_header
      _
    $region3: #{tpu_custom_call.1} parent=1 // loop_header
      %s25 = sphi 0, %s29
      %p26 = scmp.ge.s32.totalorder %s25, 4
      %s35 = sphi 0, %s37
      %s38 = sphi 0, %s35
      %s39 = sphi 0, %s38
      %s55 = sphi 0, %s39
      %s59 = sphi 0, %s59
      %s61 = sphi 0, %s59
      %s62 = sphi 0, %s61
      %s76 = sphi 0, %s62
      %s80 = sphi 0, %s80
      %s82 = sphi 0, %s80
      %s83 = sphi 0, %s82
      %s97 = sphi 0, %s83
      %s101 = sphi 0, %s101
      %s103 = sphi 0, %s101
      %s104 = sphi 0, %s103
      %s118 = sphi 0, %s104
      %s122 = sphi 0, %s122
      %s124 = sphi 0, %s122
      %s125 = sphi 0, %s124
      %s139 = sphi 0, %s125
      %s143 = sphi 0, %s143
      %s145 = sphi 0, %s143
      %s146 = sphi 0, %s145
      %s160 = sphi 0, %s146
      %s164 = sphi 0, %s164
      %s166 = sphi 0, %s164
      %s167 = sphi 0, %s166
      %s181 = sphi 0, %s167
      %s185 = sphi 0, %s185
      %s187 = sphi 0, %s185
      %s188 = sphi 0, %s187
      %s202 = sphi 0, %s188
      %s206 = sphi 0, %s206
      %s208 = sphi 0, %s206
      %s209 = sphi 0, %s208
      %s223 = sphi 0, %s209
      %s227 = sphi 0, %s227
      %s229 = sphi 0, %s227
      %s230 = sphi 0, %s229
      %s244 = sphi 0, %s230
      %s248 = sphi 0, %s248
      %s250 = sphi 0, %s248
      %s251 = sphi 0, %s250
      %s265 = sphi 0, %s251
      %s271 = sphi 0, %s273
      %s274 = sphi 0, %s271
      %s275 = sphi 0, %s274
      %s291 = sphi 0, %s275
    $region4: #{tpu_custom_call.1} parent=1 // loop_header_branch
      %28 = sbr.rel (%p26) target = $region8
    $region5: #{tpu_custom_call.1} parent=1 // loop_body
      %s30 = ssub.s32 %s25, 1
      %s31 = ssub.s32 %s25, 2
      %s32 = sadd.s32 %s25, 1
      %s33 = ssub.s32 %s25, %s32
      %p34 = scmp.eq.s32.totalorder %s33, 0
      %s36 = sadd.s32 %s35, 1
      %s37 = scalar_select %p34, %s35, %s36
      %p40 = pneg %p34
      %p41 = scmp.eq.s32.totalorder %s25, 1
      %p42 = por %p40, %p41
      %p43 = scmp.ne.s32.totalorder %s35, %s38
      %p44 = scmp.eq.s32.totalorder %s25, 0
      %p45 = por %p43, %p44
      %p46 = scmp.ne.s32.totalorder %s35, %s38
      %p47 = scmp.eq.s32.totalorder %s30, 1
      %p48 = por %p46, %p47
      %p49 = scmp.ne.s32.totalorder %s38, %s39
      %p50 = scmp.eq.s32.totalorder %s30, 0
      %p51 = por %p49, %p50
      %p52 = scmp.ne.s32.totalorder %s38, %s39
      %p53 = scmp.eq.s32.totalorder %s31, 1
      %p54 = por %p52, %p53
      %p56 = scmp.ne.s32.totalorder %s39, %s55
      %p57 = scmp.eq.s32.totalorder %s31, 0
      %p58 = por %p56, %p57
      %s60 = sadd.s32 %s59, 1
      %p63 = scmp.eq.s32.totalorder %s25, 1
      %p64 = scmp.ne.s32.totalorder %s59, %s61
      %p65 = scmp.eq.s32.totalorder %s25, 0
      %p66 = por %p64, %p65
      %p67 = scmp.ne.s32.totalorder %s59, %s61
      %p68 = scmp.eq.s32.totalorder %s30, 1
      %p69 = por %p67, %p68
      %p70 = scmp.ne.s32.totalorder %s61, %s62
      %p71 = scmp.eq.s32.totalorder %s30, 0
      %p72 = por %p70, %p71
      %p73 = scmp.ne.s32.totalorder %s61, %s62
      %p74 = scmp.eq.s32.totalorder %s31, 1
      %p75 = por %p73, %p74
      %p77 = scmp.ne.s32.totalorder %s62, %s76
      %p78 = scmp.eq.s32.totalorder %s31, 0
      %p79 = por %p77, %p78
      %s81 = sadd.s32 %s80, 1
      %p84 = scmp.eq.s32.totalorder %s25, 1
      %p85 = scmp.ne.s32.totalorder %s80, %s82
      %p86 = scmp.eq.s32.totalorder %s25, 0
      %p87 = por %p85, %p86
      %p88 = scmp.ne.s32.totalorder %s80, %s82
      %p89 = scmp.eq.s32.totalorder %s30, 1
      %p90 = por %p88, %p89
      %p91 = scmp.ne.s32.totalorder %s82, %s83
      %p92 = scmp.eq.s32.totalorder %s30, 0
      %p93 = por %p91, %p92
      %p94 = scmp.ne.s32.totalorder %s82, %s83
      %p95 = scmp.eq.s32.totalorder %s31, 1
      %p96 = por %p94, %p95
      %p98 = scmp.ne.s32.totalorder %s83, %s97
      %p99 = scmp.eq.s32.totalorder %s31, 0
      %p100 = por %p98, %p99
      %s102 = sadd.s32 %s101, 1
      %p105 = scmp.eq.s32.totalorder %s25, 1
      %p106 = scmp.ne.s32.totalorder %s101, %s103
      %p107 = scmp.eq.s32.totalorder %s25, 0
      %p108 = por %p106, %p107
      %p109 = scmp.ne.s32.totalorder %s101, %s103
      %p110 = scmp.eq.s32.totalorder %s30, 1
      %p111 = por %p109, %p110
      %p112 = scmp.ne.s32.totalorder %s103, %s104
      %p113 = scmp.eq.s32.totalorder %s30, 0
      %p114 = por %p112, %p113
      %p115 = scmp.ne.s32.totalorder %s103, %s104
      %p116 = scmp.eq.s32.totalorder %s31, 1
      %p117 = por %p115, %p116
      %p119 = scmp.ne.s32.totalorder %s104, %s118
      %p120 = scmp.eq.s32.totalorder %s31, 0
      %p121 = por %p119, %p120
      %s123 = sadd.s32 %s122, 1
      %p126 = scmp.eq.s32.totalorder %s25, 1
      %p127 = scmp.ne.s32.totalorder %s122, %s124
      %p128 = scmp.eq.s32.totalorder %s25, 0
      %p129 = por %p127, %p128
      %p130 = scmp.ne.s32.totalorder %s122, %s124
      %p131 = scmp.eq.s32.totalorder %s30, 1
      %p132 = por %p130, %p131
      %p133 = scmp.ne.s32.totalorder %s124, %s125
      %p134 = scmp.eq.s32.totalorder %s30, 0
      %p135 = por %p133, %p134
      %p136 = scmp.ne.s32.totalorder %s124, %s125
      %p137 = scmp.eq.s32.totalorder %s31, 1
      %p138 = por %p136, %p137
      %p140 = scmp.ne.s32.totalorder %s125, %s139
      %p141 = scmp.eq.s32.totalorder %s31, 0
      %p142 = por %p140, %p141
      %s144 = sadd.s32 %s143, 1
      %p147 = scmp.eq.s32.totalorder %s25, 1
      %p148 = scmp.ne.s32.totalorder %s143, %s145
      %p149 = scmp.eq.s32.totalorder %s25, 0
      %p150 = por %p148, %p149
      %p151 = scmp.ne.s32.totalorder %s143, %s145
      %p152 = scmp.eq.s32.totalorder %s30, 1
      %p153 = por %p151, %p152
      %p154 = scmp.ne.s32.totalorder %s145, %s146
      %p155 = scmp.eq.s32.totalorder %s30, 0
      %p156 = por %p154, %p155
      %p157 = scmp.ne.s32.totalorder %s145, %s146
      %p158 = scmp.eq.s32.totalorder %s31, 1
      %p159 = por %p157, %p158
      %p161 = scmp.ne.s32.totalorder %s146, %s160
      %p162 = scmp.eq.s32.totalorder %s31, 0
      %p163 = por %p161, %p162
      %s165 = sadd.s32 %s164, 1
      %p168 = scmp.eq.s32.totalorder %s25, 1
      %p169 = scmp.ne.s32.totalorder %s164, %s166
      %p170 = scmp.eq.s32.totalorder %s25, 0
      %p171 = por %p169, %p170
      %p172 = scmp.ne.s32.totalorder %s164, %s166
      %p173 = scmp.eq.s32.totalorder %s30, 1
      %p174 = por %p172, %p173
      %p175 = scmp.ne.s32.totalorder %s166, %s167
      %p176 = scmp.eq.s32.totalorder %s30, 0
      %p177 = por %p175, %p176
      %p178 = scmp.ne.s32.totalorder %s166, %s167
      %p179 = scmp.eq.s32.totalorder %s31, 1
      %p180 = por %p178, %p179
      %p182 = scmp.ne.s32.totalorder %s167, %s181
      %p183 = scmp.eq.s32.totalorder %s31, 0
      %p184 = por %p182, %p183
      %s186 = sadd.s32 %s185, 1
      %p189 = scmp.eq.s32.totalorder %s25, 1
      %p190 = scmp.ne.s32.totalorder %s185, %s187
      %p191 = scmp.eq.s32.totalorder %s25, 0
      %p192 = por %p190, %p191
      %p193 = scmp.ne.s32.totalorder %s185, %s187
      %p194 = scmp.eq.s32.totalorder %s30, 1
      %p195 = por %p193, %p194
      %p196 = scmp.ne.s32.totalorder %s187, %s188
      %p197 = scmp.eq.s32.totalorder %s30, 0
      %p198 = por %p196, %p197
      %p199 = scmp.ne.s32.totalorder %s187, %s188
      %p200 = scmp.eq.s32.totalorder %s31, 1
      %p201 = por %p199, %p200
      %p203 = scmp.ne.s32.totalorder %s188, %s202
      %p204 = scmp.eq.s32.totalorder %s31, 0
      %p205 = por %p203, %p204
      %s207 = sadd.s32 %s206, 1
      %p210 = scmp.eq.s32.totalorder %s25, 1
      %p211 = scmp.ne.s32.totalorder %s206, %s208
      %p212 = scmp.eq.s32.totalorder %s25, 0
      %p213 = por %p211, %p212
      %p214 = scmp.ne.s32.totalorder %s206, %s208
      %p215 = scmp.eq.s32.totalorder %s30, 1
      %p216 = por %p214, %p215
      %p217 = scmp.ne.s32.totalorder %s208, %s209
      %p218 = scmp.eq.s32.totalorder %s30, 0
      %p219 = por %p217, %p218
      %p220 = scmp.ne.s32.totalorder %s208, %s209
      %p221 = scmp.eq.s32.totalorder %s31, 1
      %p222 = por %p220, %p221
      %p224 = scmp.ne.s32.totalorder %s209, %s223
      %p225 = scmp.eq.s32.totalorder %s31, 0
      %p226 = por %p224, %p225
      %s228 = sadd.s32 %s227, 1
      %p231 = scmp.eq.s32.totalorder %s25, 1
      %p232 = scmp.ne.s32.totalorder %s227, %s229
      %p233 = scmp.eq.s32.totalorder %s25, 0
      %p234 = por %p232, %p233
      %p235 = scmp.ne.s32.totalorder %s227, %s229
      %p236 = scmp.eq.s32.totalorder %s30, 1
      %p237 = por %p235, %p236
      %p238 = scmp.ne.s32.totalorder %s229, %s230
      %p239 = scmp.eq.s32.totalorder %s30, 0
      %p240 = por %p238, %p239
      %p241 = scmp.ne.s32.totalorder %s229, %s230
      %p242 = scmp.eq.s32.totalorder %s31, 1
      %p243 = por %p241, %p242
      %p245 = scmp.ne.s32.totalorder %s230, %s244
      %p246 = scmp.eq.s32.totalorder %s31, 0
      %p247 = por %p245, %p246
      %s249 = sadd.s32 %s248, 1
      %p252 = scmp.eq.s32.totalorder %s25, 1
      %p253 = scmp.ne.s32.totalorder %s248, %s250
      %p254 = scmp.eq.s32.totalorder %s25, 0
      %p255 = por %p253, %p254
      %p256 = scmp.ne.s32.totalorder %s248, %s250
      %p257 = scmp.eq.s32.totalorder %s30, 1
      %p258 = por %p256, %p257
      %p259 = scmp.ne.s32.totalorder %s250, %s251
      %p260 = scmp.eq.s32.totalorder %s30, 0
      %p261 = por %p259, %p260
      %p262 = scmp.ne.s32.totalorder %s250, %s251
      %p263 = scmp.eq.s32.totalorder %s31, 1
      %p264 = por %p262, %p263
      %p266 = scmp.ne.s32.totalorder %s251, %s265
      %p267 = scmp.eq.s32.totalorder %s31, 0
      %p268 = por %p266, %p267
      %s269 = ssub.s32 %s25, %s32
      %p270 = scmp.eq.s32.totalorder %s269, 0
      %s272 = sadd.s32 %s271, 1
      %s273 = scalar_select %p270, %s271, %s272
      %p276 = pneg %p270
      %p277 = scmp.eq.s32.totalorder %s25, 1
      %p278 = por %p276, %p277
      %p279 = scmp.ne.s32.totalorder %s271, %s274
      %p280 = scmp.eq.s32.totalorder %s25, 0
      %p281 = por %p279, %p280
      %p282 = scmp.ne.s32.totalorder %s271, %s274
      %p283 = scmp.eq.s32.totalorder %s30, 1
      %p284 = por %p282, %p283
      %p285 = scmp.ne.s32.totalorder %s274, %s275
      %p286 = scmp.eq.s32.totalorder %s30, 0
      %p287 = por %p285, %p286
      %p288 = scmp.ne.s32.totalorder %s274, %s275
      %p289 = scmp.eq.s32.totalorder %s31, 1
      %p290 = por %p288, %p289
      %p292 = scmp.ne.s32.totalorder %s275, %s291
      %p293 = scmp.eq.s32.totalorder %s31, 0
      %p294 = por %p292, %p293
      %p295 = scmp.le.s32.totalorder 1, %s25
      %p296 = scmp.lt.s32.totalorder %s25, 3
      %p297 = pnand %p295, %p296
      %p298 = pneg %p297
      // Predicated region
      $region9: #{tpu_custom_call.1} parent=5 // pred_check
        _
      $region10: #{tpu_custom_call.1} parent=5 // pred_check_branch
        %300 = sbr.rel (%p297) target = $region12
      $region11: #{tpu_custom_call.1} parent=5 // pred_region
        %s301 = ssub.s32 %s25, 1
        // Predicated region
        $region13: #{tpu_custom_call.1} parent=11 // pred_check
          %p302 = pneg %p72
        $region14: #{tpu_custom_call.1} parent=11 // pred_check_branch
          %304 = sbr.rel (%p302) target = $region16
        $region15: #{tpu_custom_call.1} parent=11 // pred_region
          _
        $region16: #{tpu_custom_call.1} parent=11 // pred_fallthru
          _
        // Predicated region
        $region17: #{tpu_custom_call.1} parent=11 // pred_check
          %p305 = pneg %p93
        $region18: #{tpu_custom_call.1} parent=11 // pred_check_branch
          %307 = sbr.rel (%p305) target = $region20
        $region19: #{tpu_custom_call.1} parent=11 // pred_region
          %309 = vsyncadd [#allocation3], 0
          %s310 = sshll.u32 %s2, 4
          %s311 = int_to_ptr.hbm [resolvable:$true] %s310
          %s312 = sshll.u32 [#allocation2], 4
          %s313 = int_to_ptr.vmem [resolvable:$true] %s312
          %318 = dma.hbm_to_vmem [thread:$0]  %s311, 8192, %s313, [#allocation3], 256, 256, 16
        $region20: #{tpu_custom_call.1} parent=11 // pred_fallthru
          _
        // Predicated region
        $region21: #{tpu_custom_call.1} parent=11 // pred_check
          %p319 = pneg %p114
        $region22: #{tpu_custom_call.1} parent=11 // pred_check_branch
          %321 = sbr.rel (%p319) target = $region24
        $region23: #{tpu_custom_call.1} parent=11 // pred_region
          %323 = vsyncadd [#allocation6], 0
          %s324 = sshll.u32 %s3, 4
          %s325 = int_to_ptr.hbm [resolvable:$true] %s324
          %s326 = sshll.u32 [#allocation5], 4
          %s327 = int_to_ptr.vmem [resolvable:$true] %s326
          %332 = dma.hbm_to_vmem [thread:$0]  %s325, 8192, %s327, [#allocation6], 128, 128, 8
        $region24: #{tpu_custom_call.1} parent=11 // pred_fallthru
          _
        // Predicated region
        $region25: #{tpu_custom_call.1} parent=11 // pred_check
          %p333 = pneg %p135
        $region26: #{tpu_custom_call.1} parent=11 // pred_check_branch
          %335 = sbr.rel (%p333) target = $region28
        $region27: #{tpu_custom_call.1} parent=11 // pred_region
          %337 = vsyncadd [#allocation6], 0
          %s338 = sshll.u32 %s4, 4
          %s339 = int_to_ptr.hbm [resolvable:$true] %s338
          %s340 = sshll.u32 [#allocation7], 4
          %s341 = int_to_ptr.vmem [resolvable:$true] %s340
          %346 = dma.hbm_to_vmem [thread:$0]  %s339, 2048, %s341, [#allocation6], 64, 64, 4
        $region28: #{tpu_custom_call.1} parent=11 // pred_fallthru
          _
        // Predicated region
        $region29: #{tpu_custom_call.1} parent=11 // pred_check
          %p347 = pneg %p156
        $region30: #{tpu_custom_call.1} parent=11 // pred_check_branch
          %349 = sbr.rel (%p347) target = $region32
        $region31: #{tpu_custom_call.1} parent=11 // pred_region
          _
        $region32: #{tpu_custom_call.1} parent=11 // pred_fallthru
          _
        // Predicated region
        $region33: #{tpu_custom_call.1} parent=11 // pred_check
          %p350 = pneg %p177
        $region34: #{tpu_custom_call.1} parent=11 // pred_check_branch
          %352 = sbr.rel (%p350) target = $region36
        $region35: #{tpu_custom_call.1} parent=11 // pred_region
          %354 = vsyncadd [#allocation9], 0
          %s355 = sshll.u32 %s6, 4
          %s356 = int_to_ptr.hbm [resolvable:$true] %s355
          %s357 = sshll.u32 [#allocation8], 4
          %s358 = int_to_ptr.vmem [resolvable:$true] %s357
          %363 = dma.hbm_to_vmem [thread:$0]  %s356, 512, %s358, [#allocation9], 64, 64, 4
        $region36: #{tpu_custom_call.1} parent=11 // pred_fallthru
          _
        // Predicated region
        $region37: #{tpu_custom_call.1} parent=11 // pred_check
          %p364 = pneg %p198
        $region38: #{tpu_custom_call.1} parent=11 // pred_check_branch
          %366 = sbr.rel (%p364) target = $region40
        $region39: #{tpu_custom_call.1} parent=11 // pred_region
          %368 = vsyncadd [#allocation9], 0
          %s369 = sshll.u32 %s7, 4
          %s370 = int_to_ptr.hbm [resolvable:$true] %s369
          %s371 = sshll.u32 [#allocation10], 4
          %s372 = int_to_ptr.vmem [resolvable:$true] %s371
          %377 = dma.hbm_to_vmem [thread:$0]  %s370, 512, %s372, [#allocation9], 64, 64, 4
        $region40: #{tpu_custom_call.1} parent=11 // pred_fallthru
          _
        // Predicated region
        $region41: #{tpu_custom_call.1} parent=11 // pred_check
          %p378 = pneg %p219
        $region42: #{tpu_custom_call.1} parent=11 // pred_check_branch
          %380 = sbr.rel (%p378) target = $region44
        $region43: #{tpu_custom_call.1} parent=11 // pred_region
          %382 = vsyncadd [#allocation12], 0
          %s383 = sshll.u32 %s8, 4
          %s384 = int_to_ptr.hbm [resolvable:$true] %s383
          %s385 = sshll.u32 [#allocation11], 4
          %s386 = int_to_ptr.vmem [resolvable:$true] %s385
          %391 = dma.hbm_to_vmem [thread:$0]  %s384, 2048, %s386, [#allocation12], 128, 128, 8
        $region44: #{tpu_custom_call.1} parent=11 // pred_fallthru
          _
        // Predicated region
        $region45: #{tpu_custom_call.1} parent=11 // pred_check
          %p392 = pneg %p240
        $region46: #{tpu_custom_call.1} parent=11 // pred_check_branch
          %394 = sbr.rel (%p392) target = $region48
        $region47: #{tpu_custom_call.1} parent=11 // pred_region
          %396 = vsyncadd [#allocation12], 0
          %s397 = sshll.u32 %s9, 4
          %s398 = int_to_ptr.hbm [resolvable:$true] %s397
          %s399 = sshll.u32 [#allocation13], 4
          %s400 = int_to_ptr.vmem [resolvable:$true] %s399
          %405 = dma.hbm_to_vmem [thread:$0]  %s398, 8192, %s400, [#allocation12], 256, 256, 16
        $region48: #{tpu_custom_call.1} parent=11 // pred_fallthru
          _
        // Predicated region
        $region49: #{tpu_custom_call.1} parent=11 // pred_check
          %p406 = pneg %p261
        $region50: #{tpu_custom_call.1} parent=11 // pred_check_branch
          %408 = sbr.rel (%p406) target = $region52
        $region51: #{tpu_custom_call.1} parent=11 // pred_region
          %410 = vsyncadd [#allocation15], 0
          %s411 = sshll.u32 %s10, 4
          %s412 = int_to_ptr.hbm [resolvable:$true] %s411
          %s413 = sshll.u32 [#allocation14], 4
          %s414 = int_to_ptr.vmem [resolvable:$true] %s413
          %419 = dma.hbm_to_vmem [thread:$0]  %s412, 8192, %s414, [#allocation15], 128, 128, 8
        $region52: #{tpu_custom_call.1} parent=11 // pred_fallthru
          _
      $region12: #{tpu_custom_call.1} parent=5 // pred_fallthru
        _
      %p420 = scmp.lt.s32.totalorder %s25, 2
      // Predicated region
      $region53: #{tpu_custom_call.1} parent=5 // pred_check
        %p421 = pneg %p420
      $region54: #{tpu_custom_call.1} parent=5 // pred_check_branch
        %423 = sbr.rel (%p421) target = $region56
      $region55: #{tpu_custom_call.1} parent=5 // pred_region
        // Predicated region
        $region57: #{tpu_custom_call.1} parent=55 // pred_check
          %p424 = pneg %p45
        $region58: #{tpu_custom_call.1} parent=55 // pred_check_branch
          %426 = sbr.rel (%p424) target = $region60
        $region59: #{tpu_custom_call.1} parent=55 // pred_region
          %p427 = scmp.lt.s32.totalorder %s25, 1
          %s428 = scalar_select %p427, %s25, 1
          %s429 = smul.addr %s428, 2
          %s430 = smul.addr %s429, 8
          %s431 = scalar_lea.vmem %s0, %s430
        $region60: #{tpu_custom_call.1} parent=55 // pred_fallthru
          _
      $region56: #{tpu_custom_call.1} parent=5 // pred_fallthru
        _
      %p432 = scmp.le.s32.totalorder 1, %s25
      %p433 = scmp.lt.s32.totalorder %s25, 3
      %p434 = pnand %p432, %p433
      %p435 = pneg %p434
      // Predicated region
      $region61: #{tpu_custom_call.1} parent=5 // pred_check
        _
      $region62: #{tpu_custom_call.1} parent=5 // pred_check_branch
        %437 = sbr.rel (%p434) target = $region64
      $region63: #{tpu_custom_call.1} parent=5 // pred_region
        %s438 = ssub.s32 %s25, 1
        // Predicated region
        $region65: #{tpu_custom_call.1} parent=63 // pred_check
          %p439 = pneg %p93
        $region66: #{tpu_custom_call.1} parent=63 // pred_check_branch
          %441 = sbr.rel (%p439) target = $region68
        $region67: #{tpu_custom_call.1} parent=63 // pred_region
          %443 = dma.done [#allocation3], 8192
        $region68: #{tpu_custom_call.1} parent=63 // pred_fallthru
          _
        // Predicated region
        $region69: #{tpu_custom_call.1} parent=63 // pred_check
          %p444 = pneg %p114
        $region70: #{tpu_custom_call.1} parent=63 // pred_check_branch
          %446 = sbr.rel (%p444) target = $region72
        $region71: #{tpu_custom_call.1} parent=63 // pred_region
          %448 = dma.done [#allocation6], 8192
        $region72: #{tpu_custom_call.1} parent=63 // pred_fallthru
          _
        // Predicated region
        $region73: #{tpu_custom_call.1} parent=63 // pred_check
          %p449 = pneg %p135
        $region74: #{tpu_custom_call.1} parent=63 // pred_check_branch
          %451 = sbr.rel (%p449) target = $region76
        $region75: #{tpu_custom_call.1} parent=63 // pred_region
          %453 = dma.done [#allocation6], 2048
        $region76: #{tpu_custom_call.1} parent=63 // pred_fallthru
          _
        // Predicated region
        $region77: #{tpu_custom_call.1} parent=63 // pred_check
          %p454 = pneg %p177
        $region78: #{tpu_custom_call.1} parent=63 // pred_check_branch
          %456 = sbr.rel (%p454) target = $region80
        $region79: #{tpu_custom_call.1} parent=63 // pred_region
          %458 = dma.done [#allocation9], 512
        $region80: #{tpu_custom_call.1} parent=63 // pred_fallthru
          _
        // Predicated region
        $region81: #{tpu_custom_call.1} parent=63 // pred_check
          %p459 = pneg %p198
        $region82: #{tpu_custom_call.1} parent=63 // pred_check_branch
          %461 = sbr.rel (%p459) target = $region84
        $region83: #{tpu_custom_call.1} parent=63 // pred_region
          %463 = dma.done [#allocation9], 512
        $region84: #{tpu_custom_call.1} parent=63 // pred_fallthru
          _
        // Predicated region
        $region85: #{tpu_custom_call.1} parent=63 // pred_check
          %p464 = pneg %p219
        $region86: #{tpu_custom_call.1} parent=63 // pred_check_branch
          %466 = sbr.rel (%p464) target = $region88
        $region87: #{tpu_custom_call.1} parent=63 // pred_region
          %468 = dma.done [#allocation12], 2048
        $region88: #{tpu_custom_call.1} parent=63 // pred_fallthru
          _
        // Predicated region
        $region89: #{tpu_custom_call.1} parent=63 // pred_check
          %p469 = pneg %p240
        $region90: #{tpu_custom_call.1} parent=63 // pred_check_branch
          %471 = sbr.rel (%p469) target = $region92
        $region91: #{tpu_custom_call.1} parent=63 // pred_region
          %473 = dma.done [#allocation12], 8192
        $region92: #{tpu_custom_call.1} parent=63 // pred_fallthru
          _
        // Predicated region
        $region93: #{tpu_custom_call.1} parent=63 // pred_check
          %p474 = pneg %p261
        $region94: #{tpu_custom_call.1} parent=63 // pred_check_branch
          %476 = sbr.rel (%p474) target = $region96
        $region95: #{tpu_custom_call.1} parent=63 // pred_region
          %478 = dma.done [#allocation15], 8192
        $region96: #{tpu_custom_call.1} parent=63 // pred_fallthru
          _
        %p479 = scmp.lt.s32.totalorder %s30, 1
        %s480 = scalar_select %p479, %s30, 1
        %s481 = smul.addr %s480, 2
        %s482 = smul.addr %s481, 8
        %s483 = scalar_lea.vmem %s0, %s482
        %p484 = pneg %p51
        %p485 = pneg %p48
        %p486 = pneg %p72
        %p487 = pneg %p69
        %p488 = pneg %p93
        %p489 = pneg %p90
        %p490 = pneg %p114
        %p491 = pneg %p111
        %p492 = pneg %p135
        %p493 = pneg %p132
        %p494 = pneg %p156
        %p495 = pneg %p153
        %p496 = pneg %p177
        %p497 = pneg %p174
        %p498 = pneg %p198
        %p499 = pneg %p195
        %p500 = pneg %p219
        %p501 = pneg %p216
        %p502 = pneg %p240
        %p503 = pneg %p237
        %p504 = pneg %p261
        %p505 = pneg %p258
        %p506 = pneg %p287
        %p507 = pneg %p284
        %s508 = sand.u32 %s274, 1
        %s509 = scalar_lea.sflag [#allocation4], %s508
        %s510 = sand.u32 %s274, 1
        %s511 = smul.addr %s510, 16
        %s512 = scalar_lea.vmem [#allocation16], %s511
        %p513 = scmp.lt.s32.totalorder %s30, 1
        %s514 = scalar_select %p513, %s30, 1
        %s515 = smul.addr %s514, 2
        %s516 = smul.addr %s515, 8
        %s517 = scalar_lea.vmem %s0, %s516
        %v519 = vld [vmem:[%s517] sm:$0xff]
        %v520 = vld [vmem:[%s517 + $0x8] sm:$0xff]
        %v521 = vpack.c.bf16 %v519, %v519
        %v522 = vpack.c.bf16 %v520, %v520
        %v523 = vld [vmem:[#allocation2] sm:$0xff]
        %v524 = vld [vmem:[#allocation2 + $0x8] sm:$0xff]
        %v525 = vld [vmem:[#allocation2 + $0x10] sm:$0xff]
        %v526 = vld [vmem:[#allocation2 + $0x18] sm:$0xff]
        %v527 = vld [vmem:[#allocation2 + $0x20] sm:$0xff]
        %v528 = vld [vmem:[#allocation2 + $0x28] sm:$0xff]
        %v529 = vld [vmem:[#allocation2 + $0x30] sm:$0xff]
        %v530 = vld [vmem:[#allocation2 + $0x38] sm:$0xff]
        %v531 = vld [vmem:[#allocation2 + $0x40] sm:$0xff]
        %v532 = vld [vmem:[#allocation2 + $0x48] sm:$0xff]
        %v533 = vld [vmem:[#allocation2 + $0x50] sm:$0xff]
        %v534 = vld [vmem:[#allocation2 + $0x58] sm:$0xff]
        %v535 = vld [vmem:[#allocation2 + $0x60] sm:$0xff]
        %v536 = vld [vmem:[#allocation2 + $0x68] sm:$0xff]
        %v537 = vld [vmem:[#allocation2 + $0x70] sm:$0xff]
        %v538 = vld [vmem:[#allocation2 + $0x78] sm:$0xff]
        %v539 = vld [vmem:[#allocation2 + $0x80] sm:$0xff]
        %v540 = vld [vmem:[#allocation2 + $0x88] sm:$0xff]
        %v541 = vld [vmem:[#allocation2 + $0x90] sm:$0xff]
        %v542 = vld [vmem:[#allocation2 + $0x98] sm:$0xff]
        %v543 = vld [vmem:[#allocation2 + $0xa0] sm:$0xff]
        %v544 = vld [vmem:[#allocation2 + $0xa8] sm:$0xff]
        %v545 = vld [vmem:[#allocation2 + $0xb0] sm:$0xff]
        %v546 = vld [vmem:[#allocation2 + $0xb8] sm:$0xff]
        %v547 = vld [vmem:[#allocation2 + $0xc0] sm:$0xff]
        %v548 = vld [vmem:[#allocation2 + $0xc8] sm:$0xff]
        %v549 = vld [vmem:[#allocation2 + $0xd0] sm:$0xff]
        %v550 = vld [vmem:[#allocation2 + $0xd8] sm:$0xff]
        %v551 = vld [vmem:[#allocation2 + $0xe0] sm:$0xff]
        %v552 = vld [vmem:[#allocation2 + $0xe8] sm:$0xff]
        %v553 = vld [vmem:[#allocation2 + $0xf0] sm:$0xff]
        %v554 = vld [vmem:[#allocation2 + $0xf8] sm:$0xff]
        %v555 = vld [vmem:[#allocation2 + $0x100] sm:$0xff]
        %v556 = vld [vmem:[#allocation2 + $0x108] sm:$0xff]
        %v557 = vld [vmem:[#allocation2 + $0x110] sm:$0xff]
        %v558 = vld [vmem:[#allocation2 + $0x118] sm:$0xff]
        %v559 = vld [vmem:[#allocation2 + $0x120] sm:$0xff]
        %v560 = vld [vmem:[#allocation2 + $0x128] sm:$0xff]
        %v561 = vld [vmem:[#allocation2 + $0x130] sm:$0xff]
        %v562 = vld [vmem:[#allocation2 + $0x138] sm:$0xff]
        %v563 = vld [vmem:[#allocation2 + $0x140] sm:$0xff]
        %v564 = vld [vmem:[#allocation2 + $0x148] sm:$0xff]
        %v565 = vld [vmem:[#allocation2 + $0x150] sm:$0xff]
        %v566 = vld [vmem:[#allocation2 + $0x158] sm:$0xff]
        %v567 = vld [vmem:[#allocation2 + $0x160] sm:$0xff]
        %v568 = vld [vmem:[#allocation2 + $0x168] sm:$0xff]
        %v569 = vld [vmem:[#allocation2 + $0x170] sm:$0xff]
        %v570 = vld [vmem:[#allocation2 + $0x178] sm:$0xff]
        %v571 = vld [vmem:[#allocation2 + $0x180] sm:$0xff]
        %v572 = vld [vmem:[#allocation2 + $0x188] sm:$0xff]
        %v573 = vld [vmem:[#allocation2 + $0x190] sm:$0xff]
        %v574 = vld [vmem:[#allocation2 + $0x198] sm:$0xff]
        %v575 = vld [vmem:[#allocation2 + $0x1a0] sm:$0xff]
        %v576 = vld [vmem:[#allocation2 + $0x1a8] sm:$0xff]
        %v577 = vld [vmem:[#allocation2 + $0x1b0] sm:$0xff]
        %v578 = vld [vmem:[#allocation2 + $0x1b8] sm:$0xff]
        %v579 = vld [vmem:[#allocation2 + $0x1c0] sm:$0xff]
        %v580 = vld [vmem:[#allocation2 + $0x1c8] sm:$0xff]
        %v581 = vld [vmem:[#allocation2 + $0x1d0] sm:$0xff]
        %v582 = vld [vmem:[#allocation2 + $0x1d8] sm:$0xff]
        %v583 = vld [vmem:[#allocation2 + $0x1e0] sm:$0xff]
        %v584 = vld [vmem:[#allocation2 + $0x1e8] sm:$0xff]
        %v585 = vld [vmem:[#allocation2 + $0x1f0] sm:$0xff]
        %v586 = vld [vmem:[#allocation2 + $0x1f8] sm:$0xff]
        %v587 = vld [vmem:[%s1] ss:$8 sm:$0xf]
        %v589 = vperm.slane %v587, 0
        %v590 = vperm.slane %v587, 1
        %v591 = vperm.slane %v587, 2
        %v592 = vperm.slane %v587, 3
        %v661 = vunpack.c.l.b16 %v523
        %v662 = vunpack.c.h.b16 %v523
        %v663 = vunpack.c.l.b16 %v524
        %v664 = vunpack.c.h.b16 %v524
        %v665 = vunpack.c.l.b16 %v525
        %v666 = vunpack.c.h.b16 %v525
        %v667 = vunpack.c.l.b16 %v526
        %v668 = vunpack.c.h.b16 %v526
        %v669 = vunpack.c.l.b16 %v527
        %v670 = vunpack.c.h.b16 %v527
        %v671 = vunpack.c.l.b16 %v528
        %v672 = vunpack.c.h.b16 %v528
        %v673 = vunpack.c.l.b16 %v529
        %v674 = vunpack.c.h.b16 %v529
        %v675 = vunpack.c.l.b16 %v530
        %v676 = vunpack.c.h.b16 %v530
        %v677 = vunpack.c.l.b16 %v531
        %v678 = vunpack.c.h.b16 %v531
        %v679 = vunpack.c.l.b16 %v532
        %v680 = vunpack.c.h.b16 %v532
        %v681 = vunpack.c.l.b16 %v533
        %v682 = vunpack.c.h.b16 %v533
        %v683 = vunpack.c.l.b16 %v534
        %v684 = vunpack.c.h.b16 %v534
        %v685 = vunpack.c.l.b16 %v535
        %v686 = vunpack.c.h.b16 %v535
        %v687 = vunpack.c.l.b16 %v536
        %v688 = vunpack.c.h.b16 %v536
        %v689 = vunpack.c.l.b16 %v537
        %v690 = vunpack.c.h.b16 %v537
        %v691 = vunpack.c.l.b16 %v538
        %v692 = vunpack.c.h.b16 %v538
        %v693 = vunpack.c.l.b16 %v539
        %v694 = vunpack.c.h.b16 %v539
        %v695 = vunpack.c.l.b16 %v540
        %v696 = vunpack.c.h.b16 %v540
        %v697 = vunpack.c.l.b16 %v541
        %v698 = vunpack.c.h.b16 %v541
        %v699 = vunpack.c.l.b16 %v542
        %v700 = vunpack.c.h.b16 %v542
        %v701 = vunpack.c.l.b16 %v543
        %v702 = vunpack.c.h.b16 %v543
        %v703 = vunpack.c.l.b16 %v544
        %v704 = vunpack.c.h.b16 %v544
        %v705 = vunpack.c.l.b16 %v545
        %v706 = vunpack.c.h.b16 %v545
        %v707 = vunpack.c.l.b16 %v546
        %v708 = vunpack.c.h.b16 %v546
        %v709 = vunpack.c.l.b16 %v547
        %v710 = vunpack.c.h.b16 %v547
        %v711 = vunpack.c.l.b16 %v548
        %v712 = vunpack.c.h.b16 %v548
        %v713 = vunpack.c.l.b16 %v549
        %v714 = vunpack.c.h.b16 %v549
        %v715 = vunpack.c.l.b16 %v550
        %v716 = vunpack.c.h.b16 %v550
        %v717 = vunpack.c.l.b16 %v551
        %v718 = vunpack.c.h.b16 %v551
        %v719 = vunpack.c.l.b16 %v552
        %v720 = vunpack.c.h.b16 %v552
        %v721 = vunpack.c.l.b16 %v553
        %v722 = vunpack.c.h.b16 %v553
        %v723 = vunpack.c.l.b16 %v554
        %v724 = vunpack.c.h.b16 %v554
        %v725 = vunpack.c.l.b16 %v555
        %v726 = vunpack.c.h.b16 %v555
        %v727 = vunpack.c.l.b16 %v556
        %v728 = vunpack.c.h.b16 %v556
        %v729 = vunpack.c.l.b16 %v557
        %v730 = vunpack.c.h.b16 %v557
        %v731 = vunpack.c.l.b16 %v558
        %v732 = vunpack.c.h.b16 %v558
        %v733 = vunpack.c.l.b16 %v559
        %v734 = vunpack.c.h.b16 %v559
        %v735 = vunpack.c.l.b16 %v560
        %v736 = vunpack.c.h.b16 %v560
        %v737 = vunpack.c.l.b16 %v561
        %v738 = vunpack.c.h.b16 %v561
        %v739 = vunpack.c.l.b16 %v562
        %v740 = vunpack.c.h.b16 %v562
        %v741 = vunpack.c.l.b16 %v563
        %v742 = vunpack.c.h.b16 %v563
        %v743 = vunpack.c.l.b16 %v564
        %v744 = vunpack.c.h.b16 %v564
        %v745 = vunpack.c.l.b16 %v565
        %v746 = vunpack.c.h.b16 %v565
        %v747 = vunpack.c.l.b16 %v566
        %v748 = vunpack.c.h.b16 %v566
        %v749 = vunpack.c.l.b16 %v567
        %v750 = vunpack.c.h.b16 %v567
        %v751 = vunpack.c.l.b16 %v568
        %v752 = vunpack.c.h.b16 %v568
        %v753 = vunpack.c.l.b16 %v569
        %v754 = vunpack.c.h.b16 %v569
        %v755 = vunpack.c.l.b16 %v570
        %v756 = vunpack.c.h.b16 %v570
        %v757 = vunpack.c.l.b16 %v571
        %v758 = vunpack.c.h.b16 %v571
        %v759 = vunpack.c.l.b16 %v572
        %v760 = vunpack.c.h.b16 %v572
        %v761 = vunpack.c.l.b16 %v573
        %v762 = vunpack.c.h.b16 %v573
        %v763 = vunpack.c.l.b16 %v574
        %v764 = vunpack.c.h.b16 %v574
        %v765 = vunpack.c.l.b16 %v575
        %v766 = vunpack.c.h.b16 %v575
        %v767 = vunpack.c.l.b16 %v576
        %v768 = vunpack.c.h.b16 %v576
        %v769 = vunpack.c.l.b16 %v577
        %v770 = vunpack.c.h.b16 %v577
        %v771 = vunpack.c.l.b16 %v578
        %v772 = vunpack.c.h.b16 %v578
        %v773 = vunpack.c.l.b16 %v579
        %v774 = vunpack.c.h.b16 %v579
        %v775 = vunpack.c.l.b16 %v580
        %v776 = vunpack.c.h.b16 %v580
        %v777 = vunpack.c.l.b16 %v581
        %v778 = vunpack.c.h.b16 %v581
        %v779 = vunpack.c.l.b16 %v582
        %v780 = vunpack.c.h.b16 %v582
        %v781 = vunpack.c.l.b16 %v583
        %v782 = vunpack.c.h.b16 %v583
        %v783 = vunpack.c.l.b16 %v584
        %v784 = vunpack.c.h.b16 %v584
        %v785 = vunpack.c.l.b16 %v585
        %v786 = vunpack.c.h.b16 %v585
        %v787 = vunpack.c.l.b16 %v586
        %v788 = vunpack.c.h.b16 %v586
        %v789 = vpack.c.b16 %v665, %v661
        %v790 = vpack.c.b16 %v666, %v662
        %v791 = vpack.c.b16 %v667, %v663
        %v792 = vpack.c.b16 %v668, %v664
        %v793 = vpack.c.b16 %v673, %v669
        %v794 = vpack.c.b16 %v674, %v670
        %v795 = vpack.c.b16 %v675, %v671
        %v796 = vpack.c.b16 %v676, %v672
        %v797 = vpack.c.b16 %v681, %v677
        %v798 = vpack.c.b16 %v682, %v678
        %v799 = vpack.c.b16 %v683, %v679
        %v800 = vpack.c.b16 %v684, %v680
        %v801 = vpack.c.b16 %v689, %v685
        %v802 = vpack.c.b16 %v690, %v686
        %v803 = vpack.c.b16 %v691, %v687
        %v804 = vpack.c.b16 %v692, %v688
        %v805 = vpack.c.b16 %v697, %v693
        %v806 = vpack.c.b16 %v698, %v694
        %v807 = vpack.c.b16 %v699, %v695
        %v808 = vpack.c.b16 %v700, %v696
        %v809 = vpack.c.b16 %v705, %v701
        %v810 = vpack.c.b16 %v706, %v702
        %v811 = vpack.c.b16 %v707, %v703
        %v812 = vpack.c.b16 %v708, %v704
        %v813 = vpack.c.b16 %v713, %v709
        %v814 = vpack.c.b16 %v714, %v710
        %v815 = vpack.c.b16 %v715, %v711
        %v816 = vpack.c.b16 %v716, %v712
        %v817 = vpack.c.b16 %v721, %v717
        %v818 = vpack.c.b16 %v722, %v718
        %v819 = vpack.c.b16 %v723, %v719
        %v820 = vpack.c.b16 %v724, %v720
        %v821 = vpack.c.b16 %v729, %v725
        %v822 = vpack.c.b16 %v730, %v726
        %v823 = vpack.c.b16 %v731, %v727
        %v824 = vpack.c.b16 %v732, %v728
        %v825 = vpack.c.b16 %v737, %v733
        %v826 = vpack.c.b16 %v738, %v734
        %v827 = vpack.c.b16 %v739, %v735
        %v828 = vpack.c.b16 %v740, %v736
        %v829 = vpack.c.b16 %v745, %v741
        %v830 = vpack.c.b16 %v746, %v742
        %v831 = vpack.c.b16 %v747, %v743
        %v832 = vpack.c.b16 %v748, %v744
        %v833 = vpack.c.b16 %v753, %v749
        %v834 = vpack.c.b16 %v754, %v750
        %v835 = vpack.c.b16 %v755, %v751
        %v836 = vpack.c.b16 %v756, %v752
        %v837 = vpack.c.b16 %v761, %v757
        %v838 = vpack.c.b16 %v762, %v758
        %v839 = vpack.c.b16 %v763, %v759
        %v840 = vpack.c.b16 %v764, %v760
        %v841 = vpack.c.b16 %v769, %v765
        %v842 = vpack.c.b16 %v770, %v766
        %v843 = vpack.c.b16 %v771, %v767
        %v844 = vpack.c.b16 %v772, %v768
        %v845 = vpack.c.b16 %v777, %v773
        %v846 = vpack.c.b16 %v778, %v774
        %v847 = vpack.c.b16 %v779, %v775
        %v848 = vpack.c.b16 %v780, %v776
        %v849 = vpack.c.b16 %v785, %v781
        %v850 = vpack.c.b16 %v786, %v782
        %v851 = vpack.c.b16 %v787, %v783
        %v852 = vpack.c.b16 %v788, %v784
        %917 = vmatpush.bf16.msra.mxu0 %v817
        %918 = vmatpush.bf16.msra.mxu0 %v813
        %919 = vmatpush.bf16.msra.mxu0 %v809
        %920 = vmatpush.bf16.msra.mxu0 %v805
        %921 = vmatpush.bf16.msra.mxu0 %v801
        %922 = vmatpush.bf16.msra.mxu0 %v797
        %923 = vmatpush.bf16.msra.mxu0 %v793
        %924 = vmatpush.bf16.msra.mxu0 %v789
        %925 = vmatmul.bf16.gmra.mxu0 %v521
        %v926 = vpop.f32.mrf.mxu0
        %v927 = vadd.f32 %v589, %v926
        %v928 = vpop.f32.mrf.mxu0
        %929 = vdwg.mxu0
        %930 = vmatpush.bf16.msra.mxu0 %v849
        %931 = vmatpush.bf16.msra.mxu0 %v845
        %932 = vmatpush.bf16.msra.mxu0 %v841
        %933 = vmatpush.bf16.msra.mxu0 %v837
        %934 = vmatpush.bf16.msra.mxu0 %v833
        %935 = vmatpush.bf16.msra.mxu0 %v829
        %936 = vmatpush.bf16.msra.mxu0 %v825
        %937 = vmatpush.bf16.msra.mxu0 %v821
        %938 = vmatmul.bf16.gmra.mxu0 %v522
        %v939 = vpop.f32.mrf.mxu0
        %v940 = vadd.f32 %v927, %v939
        %v941 = vpop.f32.mrf.mxu0
        %942 = vdwg.mxu0
        %943 = vmatpush.bf16.msra.mxu0 %v818
        %944 = vmatpush.bf16.msra.mxu0 %v814
        %945 = vmatpush.bf16.msra.mxu0 %v810
        %946 = vmatpush.bf16.msra.mxu0 %v806
        %947 = vmatpush.bf16.msra.mxu0 %v802
        %948 = vmatpush.bf16.msra.mxu0 %v798
        %949 = vmatpush.bf16.msra.mxu0 %v794
        %950 = vmatpush.bf16.msra.mxu0 %v790
        %951 = vmatmul.bf16.gmra.mxu0 %v521
        %v952 = vpop.f32.mrf.mxu0
        %v953 = vadd.f32 %v590, %v952
        %v954 = vpop.f32.mrf.mxu0
        %955 = vdwg.mxu0
        %956 = vmatpush.bf16.msra.mxu0 %v850
        %957 = vmatpush.bf16.msra.mxu0 %v846
        %958 = vmatpush.bf16.msra.mxu0 %v842
        %959 = vmatpush.bf16.msra.mxu0 %v838
        %960 = vmatpush.bf16.msra.mxu0 %v834
        %961 = vmatpush.bf16.msra.mxu0 %v830
        %962 = vmatpush.bf16.msra.mxu0 %v826
        %963 = vmatpush.bf16.msra.mxu0 %v822
        %964 = vmatmul.bf16.gmra.mxu0 %v522
        %v965 = vpop.f32.mrf.mxu0
        %v966 = vadd.f32 %v953, %v965
        %v967 = vpop.f32.mrf.mxu0
        %968 = vdwg.mxu0
        %969 = vmatpush.bf16.msra.mxu0 %v819
        %970 = vmatpush.bf16.msra.mxu0 %v815
        %971 = vmatpush.bf16.msra.mxu0 %v811
        %972 = vmatpush.bf16.msra.mxu0 %v807
        %973 = vmatpush.bf16.msra.mxu0 %v803
        %974 = vmatpush.bf16.msra.mxu0 %v799
        %975 = vmatpush.bf16.msra.mxu0 %v795
        %976 = vmatpush.bf16.msra.mxu0 %v791
        %977 = vmatmul.bf16.gmra.mxu0 %v521
        %v978 = vpop.f32.mrf.mxu0
        %v979 = vadd.f32 %v591, %v978
        %v980 = vpop.f32.mrf.mxu0
        %981 = vdwg.mxu0
        %982 = vmatpush.bf16.msra.mxu0 %v851
        %983 = vmatpush.bf16.msra.mxu0 %v847
        %984 = vmatpush.bf16.msra.mxu0 %v843
        %985 = vmatpush.bf16.msra.mxu0 %v839
        %986 = vmatpush.bf16.msra.mxu0 %v835
        %987 = vmatpush.bf16.msra.mxu0 %v831
        %988 = vmatpush.bf16.msra.mxu0 %v827
        %989 = vmatpush.bf16.msra.mxu0 %v823
        %990 = vmatmul.bf16.gmra.mxu0 %v522
        %v991 = vpop.f32.mrf.mxu0
        %v992 = vadd.f32 %v979, %v991
        %v993 = vpop.f32.mrf.mxu0
        %994 = vdwg.mxu0
        %995 = vmatpush.bf16.msra.mxu0 %v820
        %996 = vmatpush.bf16.msra.mxu0 %v816
        %997 = vmatpush.bf16.msra.mxu0 %v812
        %998 = vmatpush.bf16.msra.mxu0 %v808
        %999 = vmatpush.bf16.msra.mxu0 %v804
        %1000 = vmatpush.bf16.msra.mxu0 %v800
        %1001 = vmatpush.bf16.msra.mxu0 %v796
        %1002 = vmatpush.bf16.msra.mxu0 %v792
        %1003 = vmatmul.bf16.gmra.mxu0 %v521
        %v1004 = vpop.f32.mrf.mxu0
        %v1005 = vadd.f32 %v592, %v1004
        %v1006 = vpop.f32.mrf.mxu0
        %1007 = vdwg.mxu0
        %1008 = vmatpush.bf16.msra.mxu0 %v852
        %1009 = vmatpush.bf16.msra.mxu0 %v848
        %1010 = vmatpush.bf16.msra.mxu0 %v844
        %1011 = vmatpush.bf16.msra.mxu0 %v840
        %1012 = vmatpush.bf16.msra.mxu0 %v836
        %1013 = vmatpush.bf16.msra.mxu0 %v832
        %1014 = vmatpush.bf16.msra.mxu0 %v828
        %1015 = vmatpush.bf16.msra.mxu0 %v824
        %1016 = vmatmul.bf16.gmra.mxu0 %v522
        %v1017 = vpop.f32.mrf.mxu0
        %v1018 = vadd.f32 %v1005, %v1017
        %v1019 = vpop.f32.mrf.mxu0
        %1020 = vdwg.mxu0
        %v1021 = vmax.f32 %v940, 0.0
        %v1022 = vmax.f32 %v966, 0.0
        %v1023 = vmax.f32 %v992, 0.0
        %v1024 = vmax.f32 %v1018, 0.0
        %v1025 = vpack.c.bf16 %v1021, %v1021
        %v1026 = vpack.c.bf16 %v1022, %v1022
        %v1027 = vpack.c.bf16 %v1023, %v1023
        %v1028 = vpack.c.bf16 %v1024, %v1024
        %v1029 = vld [vmem:[#allocation5] sm:$0xff]
        %v1030 = vld [vmem:[#allocation5 + $0x8] sm:$0xff]
        %v1031 = vld [vmem:[#allocation5 + $0x10] sm:$0xff]
        %v1032 = vld [vmem:[#allocation5 + $0x18] sm:$0xff]
        %v1033 = vld [vmem:[#allocation5 + $0x20] sm:$0xff]
        %v1034 = vld [vmem:[#allocation5 + $0x28] sm:$0xff]
        %v1035 = vld [vmem:[#allocation5 + $0x30] sm:$0xff]
        %v1036 = vld [vmem:[#allocation5 + $0x38] sm:$0xff]
        %v1037 = vld [vmem:[#allocation5 + $0x40] sm:$0xff]
        %v1038 = vld [vmem:[#allocation5 + $0x48] sm:$0xff]
        %v1039 = vld [vmem:[#allocation5 + $0x50] sm:$0xff]
        %v1040 = vld [vmem:[#allocation5 + $0x58] sm:$0xff]
        %v1041 = vld [vmem:[#allocation5 + $0x60] sm:$0xff]
        %v1042 = vld [vmem:[#allocation5 + $0x68] sm:$0xff]
        %v1043 = vld [vmem:[#allocation5 + $0x70] sm:$0xff]
        %v1044 = vld [vmem:[#allocation5 + $0x78] sm:$0xff]
        %v1045 = vld [vmem:[#allocation5 + $0x80] sm:$0xff]
        %v1046 = vld [vmem:[#allocation5 + $0x88] sm:$0xff]
        %v1047 = vld [vmem:[#allocation5 + $0x90] sm:$0xff]
        %v1048 = vld [vmem:[#allocation5 + $0x98] sm:$0xff]
        %v1049 = vld [vmem:[#allocation5 + $0xa0] sm:$0xff]
        %v1050 = vld [vmem:[#allocation5 + $0xa8] sm:$0xff]
        %v1051 = vld [vmem:[#allocation5 + $0xb0] sm:$0xff]
        %v1052 = vld [vmem:[#allocation5 + $0xb8] sm:$0xff]
        %v1053 = vld [vmem:[#allocation5 + $0xc0] sm:$0xff]
        %v1054 = vld [vmem:[#allocation5 + $0xc8] sm:$0xff]
        %v1055 = vld [vmem:[#allocation5 + $0xd0] sm:$0xff]
        %v1056 = vld [vmem:[#allocation5 + $0xd8] sm:$0xff]
        %v1057 = vld [vmem:[#allocation5 + $0xe0] sm:$0xff]
        %v1058 = vld [vmem:[#allocation5 + $0xe8] sm:$0xff]
        %v1059 = vld [vmem:[#allocation5 + $0xf0] sm:$0xff]
        %v1060 = vld [vmem:[#allocation5 + $0xf8] sm:$0xff]
        %v1061 = vld [vmem:[#allocation5 + $0x100] sm:$0xff]
        %v1062 = vld [vmem:[#allocation5 + $0x108] sm:$0xff]
        %v1063 = vld [vmem:[#allocation5 + $0x110] sm:$0xff]
        %v1064 = vld [vmem:[#allocation5 + $0x118] sm:$0xff]
        %v1065 = vld [vmem:[#allocation5 + $0x120] sm:$0xff]
        %v1066 = vld [vmem:[#allocation5 + $0x128] sm:$0xff]
        %v1067 = vld [vmem:[#allocation5 + $0x130] sm:$0xff]
        %v1068 = vld [vmem:[#allocation5 + $0x138] sm:$0xff]
        %v1069 = vld [vmem:[#allocation5 + $0x140] sm:$0xff]
        %v1070 = vld [vmem:[#allocation5 + $0x148] sm:$0xff]
        %v1071 = vld [vmem:[#allocation5 + $0x150] sm:$0xff]
        %v1072 = vld [vmem:[#allocation5 + $0x158] sm:$0xff]
        %v1073 = vld [vmem:[#allocation5 + $0x160] sm:$0xff]
        %v1074 = vld [vmem:[#allocation5 + $0x168] sm:$0xff]
        %v1075 = vld [vmem:[#allocation5 + $0x170] sm:$0xff]
        %v1076 = vld [vmem:[#allocation5 + $0x178] sm:$0xff]
        %v1077 = vld [vmem:[#allocation5 + $0x180] sm:$0xff]
        %v1078 = vld [vmem:[#allocation5 + $0x188] sm:$0xff]
        %v1079 = vld [vmem:[#allocation5 + $0x190] sm:$0xff]
        %v1080 = vld [vmem:[#allocation5 + $0x198] sm:$0xff]
        %v1081 = vld [vmem:[#allocation5 + $0x1a0] sm:$0xff]
        %v1082 = vld [vmem:[#allocation5 + $0x1a8] sm:$0xff]
        %v1083 = vld [vmem:[#allocation5 + $0x1b0] sm:$0xff]
        %v1084 = vld [vmem:[#allocation5 + $0x1b8] sm:$0xff]
        %v1085 = vld [vmem:[#allocation5 + $0x1c0] sm:$0xff]
        %v1086 = vld [vmem:[#allocation5 + $0x1c8] sm:$0xff]
        %v1087 = vld [vmem:[#allocation5 + $0x1d0] sm:$0xff]
        %v1088 = vld [vmem:[#allocation5 + $0x1d8] sm:$0xff]
        %v1089 = vld [vmem:[#allocation5 + $0x1e0] sm:$0xff]
        %v1090 = vld [vmem:[#allocation5 + $0x1e8] sm:$0xff]
        %v1091 = vld [vmem:[#allocation5 + $0x1f0] sm:$0xff]
        %v1092 = vld [vmem:[#allocation5 + $0x1f8] sm:$0xff]
        %s1093 = scalar_lea.vmem %s1, 1
        %v1094 = vld [vmem:[%s1093] ss:$8 sm:$0x3]
        %v1096 = vperm.slane %v1094, 0
        %v1097 = vperm.slane %v1094, 1
        %v1164 = vunpack.c.l.b16 %v1029
        %v1165 = vunpack.c.h.b16 %v1029
        %v1166 = vunpack.c.l.b16 %v1030
        %v1167 = vunpack.c.h.b16 %v1030
        %v1168 = vunpack.c.l.b16 %v1031
        %v1169 = vunpack.c.h.b16 %v1031
        %v1170 = vunpack.c.l.b16 %v1032
        %v1171 = vunpack.c.h.b16 %v1032
        %v1172 = vunpack.c.l.b16 %v1033
        %v1173 = vunpack.c.h.b16 %v1033
        %v1174 = vunpack.c.l.b16 %v1034
        %v1175 = vunpack.c.h.b16 %v1034
        %v1176 = vunpack.c.l.b16 %v1035
        %v1177 = vunpack.c.h.b16 %v1035
        %v1178 = vunpack.c.l.b16 %v1036
        %v1179 = vunpack.c.h.b16 %v1036
        %v1180 = vunpack.c.l.b16 %v1037
        %v1181 = vunpack.c.h.b16 %v1037
        %v1182 = vunpack.c.l.b16 %v1038
        %v1183 = vunpack.c.h.b16 %v1038
        %v1184 = vunpack.c.l.b16 %v1039
        %v1185 = vunpack.c.h.b16 %v1039
        %v1186 = vunpack.c.l.b16 %v1040
        %v1187 = vunpack.c.h.b16 %v1040
        %v1188 = vunpack.c.l.b16 %v1041
        %v1189 = vunpack.c.h.b16 %v1041
        %v1190 = vunpack.c.l.b16 %v1042
        %v1191 = vunpack.c.h.b16 %v1042
        %v1192 = vunpack.c.l.b16 %v1043
        %v1193 = vunpack.c.h.b16 %v1043
        %v1194 = vunpack.c.l.b16 %v1044
        %v1195 = vunpack.c.h.b16 %v1044
        %v1196 = vunpack.c.l.b16 %v1045
        %v1197 = vunpack.c.h.b16 %v1045
        %v1198 = vunpack.c.l.b16 %v1046
        %v1199 = vunpack.c.h.b16 %v1046
        %v1200 = vunpack.c.l.b16 %v1047
        %v1201 = vunpack.c.h.b16 %v1047
        %v1202 = vunpack.c.l.b16 %v1048
        %v1203 = vunpack.c.h.b16 %v1048
        %v1204 = vunpack.c.l.b16 %v1049
        %v1205 = vunpack.c.h.b16 %v1049
        %v1206 = vunpack.c.l.b16 %v1050
        %v1207 = vunpack.c.h.b16 %v1050
        %v1208 = vunpack.c.l.b16 %v1051
        %v1209 = vunpack.c.h.b16 %v1051
        %v1210 = vunpack.c.l.b16 %v1052
        %v1211 = vunpack.c.h.b16 %v1052
        %v1212 = vunpack.c.l.b16 %v1053
        %v1213 = vunpack.c.h.b16 %v1053
        %v1214 = vunpack.c.l.b16 %v1054
        %v1215 = vunpack.c.h.b16 %v1054
        %v1216 = vunpack.c.l.b16 %v1055
        %v1217 = vunpack.c.h.b16 %v1055
        %v1218 = vunpack.c.l.b16 %v1056
        %v1219 = vunpack.c.h.b16 %v1056
        %v1220 = vunpack.c.l.b16 %v1057
        %v1221 = vunpack.c.h.b16 %v1057
        %v1222 = vunpack.c.l.b16 %v1058
        %v1223 = vunpack.c.h.b16 %v1058
        %v1224 = vunpack.c.l.b16 %v1059
        %v1225 = vunpack.c.h.b16 %v1059
        %v1226 = vunpack.c.l.b16 %v1060
        %v1227 = vunpack.c.h.b16 %v1060
        %v1228 = vunpack.c.l.b16 %v1061
        %v1229 = vunpack.c.h.b16 %v1061
        %v1230 = vunpack.c.l.b16 %v1062
        %v1231 = vunpack.c.h.b16 %v1062
        %v1232 = vunpack.c.l.b16 %v1063
        %v1233 = vunpack.c.h.b16 %v1063
        %v1234 = vunpack.c.l.b16 %v1064
        %v1235 = vunpack.c.h.b16 %v1064
        %v1236 = vunpack.c.l.b16 %v1065
        %v1237 = vunpack.c.h.b16 %v1065
        %v1238 = vunpack.c.l.b16 %v1066
        %v1239 = vunpack.c.h.b16 %v1066
        %v1240 = vunpack.c.l.b16 %v1067
        %v1241 = vunpack.c.h.b16 %v1067
        %v1242 = vunpack.c.l.b16 %v1068
        %v1243 = vunpack.c.h.b16 %v1068
        %v1244 = vunpack.c.l.b16 %v1069
        %v1245 = vunpack.c.h.b16 %v1069
        %v1246 = vunpack.c.l.b16 %v1070
        %v1247 = vunpack.c.h.b16 %v1070
        %v1248 = vunpack.c.l.b16 %v1071
        %v1249 = vunpack.c.h.b16 %v1071
        %v1250 = vunpack.c.l.b16 %v1072
        %v1251 = vunpack.c.h.b16 %v1072
        %v1252 = vunpack.c.l.b16 %v1073
        %v1253 = vunpack.c.h.b16 %v1073
        %v1254 = vunpack.c.l.b16 %v1074
        %v1255 = vunpack.c.h.b16 %v1074
        %v1256 = vunpack.c.l.b16 %v1075
        %v1257 = vunpack.c.h.b16 %v1075
        %v1258 = vunpack.c.l.b16 %v1076
        %v1259 = vunpack.c.h.b16 %v1076
        %v1260 = vunpack.c.l.b16 %v1077
        %v1261 = vunpack.c.h.b16 %v1077
        %v1262 = vunpack.c.l.b16 %v1078
        %v1263 = vunpack.c.h.b16 %v1078
        %v1264 = vunpack.c.l.b16 %v1079
        %v1265 = vunpack.c.h.b16 %v1079
        %v1266 = vunpack.c.l.b16 %v1080
        %v1267 = vunpack.c.h.b16 %v1080
        %v1268 = vunpack.c.l.b16 %v1081
        %v1269 = vunpack.c.h.b16 %v1081
        %v1270 = vunpack.c.l.b16 %v1082
        %v1271 = vunpack.c.h.b16 %v1082
        %v1272 = vunpack.c.l.b16 %v1083
        %v1273 = vunpack.c.h.b16 %v1083
        %v1274 = vunpack.c.l.b16 %v1084
        %v1275 = vunpack.c.h.b16 %v1084
        %v1276 = vunpack.c.l.b16 %v1085
        %v1277 = vunpack.c.h.b16 %v1085
        %v1278 = vunpack.c.l.b16 %v1086
        %v1279 = vunpack.c.h.b16 %v1086
        %v1280 = vunpack.c.l.b16 %v1087
        %v1281 = vunpack.c.h.b16 %v1087
        %v1282 = vunpack.c.l.b16 %v1088
        %v1283 = vunpack.c.h.b16 %v1088
        %v1284 = vunpack.c.l.b16 %v1089
        %v1285 = vunpack.c.h.b16 %v1089
        %v1286 = vunpack.c.l.b16 %v1090
        %v1287 = vunpack.c.h.b16 %v1090
        %v1288 = vunpack.c.l.b16 %v1091
        %v1289 = vunpack.c.h.b16 %v1091
        %v1290 = vunpack.c.l.b16 %v1092
        %v1291 = vunpack.c.h.b16 %v1092
        %v1292 = vpack.c.b16 %v1166, %v1164
        %v1293 = vpack.c.b16 %v1167, %v1165
        %v1294 = vpack.c.b16 %v1170, %v1168
        %v1295 = vpack.c.b16 %v1171, %v1169
        %v1296 = vpack.c.b16 %v1174, %v1172
        %v1297 = vpack.c.b16 %v1175, %v1173
        %v1298 = vpack.c.b16 %v1178, %v1176
        %v1299 = vpack.c.b16 %v1179, %v1177
        %v1300 = vpack.c.b16 %v1182, %v1180
        %v1301 = vpack.c.b16 %v1183, %v1181
        %v1302 = vpack.c.b16 %v1186, %v1184
        %v1303 = vpack.c.b16 %v1187, %v1185
        %v1304 = vpack.c.b16 %v1190, %v1188
        %v1305 = vpack.c.b16 %v1191, %v1189
        %v1306 = vpack.c.b16 %v1194, %v1192
        %v1307 = vpack.c.b16 %v1195, %v1193
        %v1308 = vpack.c.b16 %v1198, %v1196
        %v1309 = vpack.c.b16 %v1199, %v1197
        %v1310 = vpack.c.b16 %v1202, %v1200
        %v1311 = vpack.c.b16 %v1203, %v1201
        %v1312 = vpack.c.b16 %v1206, %v1204
        %v1313 = vpack.c.b16 %v1207, %v1205
        %v1314 = vpack.c.b16 %v1210, %v1208
        %v1315 = vpack.c.b16 %v1211, %v1209
        %v1316 = vpack.c.b16 %v1214, %v1212
        %v1317 = vpack.c.b16 %v1215, %v1213
        %v1318 = vpack.c.b16 %v1218, %v1216
        %v1319 = vpack.c.b16 %v1219, %v1217
        %v1320 = vpack.c.b16 %v1222, %v1220
        %v1321 = vpack.c.b16 %v1223, %v1221
        %v1322 = vpack.c.b16 %v1226, %v1224
        %v1323 = vpack.c.b16 %v1227, %v1225
        %v1324 = vpack.c.b16 %v1230, %v1228
        %v1325 = vpack.c.b16 %v1231, %v1229
        %v1326 = vpack.c.b16 %v1234, %v1232
        %v1327 = vpack.c.b16 %v1235, %v1233
        %v1328 = vpack.c.b16 %v1238, %v1236
        %v1329 = vpack.c.b16 %v1239, %v1237
        %v1330 = vpack.c.b16 %v1242, %v1240
        %v1331 = vpack.c.b16 %v1243, %v1241
        %v1332 = vpack.c.b16 %v1246, %v1244
        %v1333 = vpack.c.b16 %v1247, %v1245
        %v1334 = vpack.c.b16 %v1250, %v1248
        %v1335 = vpack.c.b16 %v1251, %v1249
        %v1336 = vpack.c.b16 %v1254, %v1252
        %v1337 = vpack.c.b16 %v1255, %v1253
        %v1338 = vpack.c.b16 %v1258, %v1256
        %v1339 = vpack.c.b16 %v1259, %v1257
        %v1340 = vpack.c.b16 %v1262, %v1260
        %v1341 = vpack.c.b16 %v1263, %v1261
        %v1342 = vpack.c.b16 %v1266, %v1264
        %v1343 = vpack.c.b16 %v1267, %v1265
        %v1344 = vpack.c.b16 %v1270, %v1268
        %v1345 = vpack.c.b16 %v1271, %v1269
        %v1346 = vpack.c.b16 %v1274, %v1272
        %v1347 = vpack.c.b16 %v1275, %v1273
        %v1348 = vpack.c.b16 %v1278, %v1276
        %v1349 = vpack.c.b16 %v1279, %v1277
        %v1350 = vpack.c.b16 %v1282, %v1280
        %v1351 = vpack.c.b16 %v1283, %v1281
        %v1352 = vpack.c.b16 %v1286, %v1284
        %v1353 = vpack.c.b16 %v1287, %v1285
        %v1354 = vpack.c.b16 %v1290, %v1288
        %v1355 = vpack.c.b16 %v1291, %v1289
        %1420 = vmatpush.bf16.msra.mxu0 %v1306
        %1421 = vmatpush.bf16.msra.mxu0 %v1304
        %1422 = vmatpush.bf16.msra.mxu0 %v1302
        %1423 = vmatpush.bf16.msra.mxu0 %v1300
        %1424 = vmatpush.bf16.msra.mxu0 %v1298
        %1425 = vmatpush.bf16.msra.mxu0 %v1296
        %1426 = vmatpush.bf16.msra.mxu0 %v1294
        %1427 = vmatpush.bf16.msra.mxu0 %v1292
        %1428 = vmatmul.bf16.gmra.mxu0 %v1025
        %v1429 = vpop.f32.mrf.mxu0
        %v1430 = vadd.f32 %v1096, %v1429
        %v1431 = vpop.f32.mrf.mxu0
        %1432 = vdwg.mxu0
        %1433 = vmatpush.bf16.msra.mxu0 %v1322
        %1434 = vmatpush.bf16.msra.mxu0 %v1320
        %1435 = vmatpush.bf16.msra.mxu0 %v1318
        %1436 = vmatpush.bf16.msra.mxu0 %v1316
        %1437 = vmatpush.bf16.msra.mxu0 %v1314
        %1438 = vmatpush.bf16.msra.mxu0 %v1312
        %1439 = vmatpush.bf16.msra.mxu0 %v1310
        %1440 = vmatpush.bf16.msra.mxu0 %v1308
        %1441 = vmatmul.bf16.gmra.mxu0 %v1026
        %v1442 = vpop.f32.mrf.mxu0
        %v1443 = vadd.f32 %v1430, %v1442
        %v1444 = vpop.f32.mrf.mxu0
        %1445 = vdwg.mxu0
        %1446 = vmatpush.bf16.msra.mxu0 %v1338
        %1447 = vmatpush.bf16.msra.mxu0 %v1336
        %1448 = vmatpush.bf16.msra.mxu0 %v1334
        %1449 = vmatpush.bf16.msra.mxu0 %v1332
        %1450 = vmatpush.bf16.msra.mxu0 %v1330
        %1451 = vmatpush.bf16.msra.mxu0 %v1328
        %1452 = vmatpush.bf16.msra.mxu0 %v1326
        %1453 = vmatpush.bf16.msra.mxu0 %v1324
        %1454 = vmatmul.bf16.gmra.mxu0 %v1027
        %v1455 = vpop.f32.mrf.mxu0
        %v1456 = vadd.f32 %v1443, %v1455
        %v1457 = vpop.f32.mrf.mxu0
        %1458 = vdwg.mxu0
        %1459 = vmatpush.bf16.msra.mxu0 %v1354
        %1460 = vmatpush.bf16.msra.mxu0 %v1352
        %1461 = vmatpush.bf16.msra.mxu0 %v1350
        %1462 = vmatpush.bf16.msra.mxu0 %v1348
        %1463 = vmatpush.bf16.msra.mxu0 %v1346
        %1464 = vmatpush.bf16.msra.mxu0 %v1344
        %1465 = vmatpush.bf16.msra.mxu0 %v1342
        %1466 = vmatpush.bf16.msra.mxu0 %v1340
        %1467 = vmatmul.bf16.gmra.mxu0 %v1028
        %v1468 = vpop.f32.mrf.mxu0
        %v1469 = vadd.f32 %v1456, %v1468
        %v1470 = vpop.f32.mrf.mxu0
        %1471 = vdwg.mxu0
        %1472 = vmatpush.bf16.msra.mxu0 %v1307
        %1473 = vmatpush.bf16.msra.mxu0 %v1305
        %1474 = vmatpush.bf16.msra.mxu0 %v1303
        %1475 = vmatpush.bf16.msra.mxu0 %v1301
        %1476 = vmatpush.bf16.msra.mxu0 %v1299
        %1477 = vmatpush.bf16.msra.mxu0 %v1297
        %1478 = vmatpush.bf16.msra.mxu0 %v1295
        %1479 = vmatpush.bf16.msra.mxu0 %v1293
        %1480 = vmatmul.bf16.gmra.mxu0 %v1025
        %v1481 = vpop.f32.mrf.mxu0
        %v1482 = vadd.f32 %v1097, %v1481
        %v1483 = vpop.f32.mrf.mxu0
        %1484 = vdwg.mxu0
        %1485 = vmatpush.bf16.msra.mxu0 %v1323
        %1486 = vmatpush.bf16.msra.mxu0 %v1321
        %1487 = vmatpush.bf16.msra.mxu0 %v1319
        %1488 = vmatpush.bf16.msra.mxu0 %v1317
        %1489 = vmatpush.bf16.msra.mxu0 %v1315
        %1490 = vmatpush.bf16.msra.mxu0 %v1313
        %1491 = vmatpush.bf16.msra.mxu0 %v1311
        %1492 = vmatpush.bf16.msra.mxu0 %v1309
        %1493 = vmatmul.bf16.gmra.mxu0 %v1026
        %v1494 = vpop.f32.mrf.mxu0
        %v1495 = vadd.f32 %v1482, %v1494
        %v1496 = vpop.f32.mrf.mxu0
        %1497 = vdwg.mxu0
        %1498 = vmatpush.bf16.msra.mxu0 %v1339
        %1499 = vmatpush.bf16.msra.mxu0 %v1337
        %1500 = vmatpush.bf16.msra.mxu0 %v1335
        %1501 = vmatpush.bf16.msra.mxu0 %v1333
        %1502 = vmatpush.bf16.msra.mxu0 %v1331
        %1503 = vmatpush.bf16.msra.mxu0 %v1329
        %1504 = vmatpush.bf16.msra.mxu0 %v1327
        %1505 = vmatpush.bf16.msra.mxu0 %v1325
        %1506 = vmatmul.bf16.gmra.mxu0 %v1027
        %v1507 = vpop.f32.mrf.mxu0
        %v1508 = vadd.f32 %v1495, %v1507
        %v1509 = vpop.f32.mrf.mxu0
        %1510 = vdwg.mxu0
        %1511 = vmatpush.bf16.msra.mxu0 %v1355
        %1512 = vmatpush.bf16.msra.mxu0 %v1353
        %1513 = vmatpush.bf16.msra.mxu0 %v1351
        %1514 = vmatpush.bf16.msra.mxu0 %v1349
        %1515 = vmatpush.bf16.msra.mxu0 %v1347
        %1516 = vmatpush.bf16.msra.mxu0 %v1345
        %1517 = vmatpush.bf16.msra.mxu0 %v1343
        %1518 = vmatpush.bf16.msra.mxu0 %v1341
        %1519 = vmatmul.bf16.gmra.mxu0 %v1028
        %v1520 = vpop.f32.mrf.mxu0
        %v1521 = vadd.f32 %v1508, %v1520
        %v1522 = vpop.f32.mrf.mxu0
        %1523 = vdwg.mxu0
        %v1524 = vmax.f32 %v1469, 0.0
        %v1525 = vmax.f32 %v1521, 0.0
        %v1526 = vpack.c.bf16 %v1524, %v1524
        %v1527 = vpack.c.bf16 %v1525, %v1525
        %v1528 = vld [vmem:[#allocation7] sm:$0xf]
        %v1529 = vld [vmem:[#allocation7 + $0x4] sm:$0xf]
        %v1530 = vld [vmem:[#allocation7 + $0x8] sm:$0xf]
        %v1531 = vld [vmem:[#allocation7 + $0xc] sm:$0xf]
        %v1532 = vld [vmem:[#allocation7 + $0x10] sm:$0xf]
        %v1533 = vld [vmem:[#allocation7 + $0x14] sm:$0xf]
        %v1534 = vld [vmem:[#allocation7 + $0x18] sm:$0xf]
        %v1535 = vld [vmem:[#allocation7 + $0x1c] sm:$0xf]
        %v1536 = vld [vmem:[#allocation7 + $0x20] sm:$0xf]
        %v1537 = vld [vmem:[#allocation7 + $0x24] sm:$0xf]
        %v1538 = vld [vmem:[#allocation7 + $0x28] sm:$0xf]
        %v1539 = vld [vmem:[#allocation7 + $0x2c] sm:$0xf]
        %v1540 = vld [vmem:[#allocation7 + $0x30] sm:$0xf]
        %v1541 = vld [vmem:[#allocation7 + $0x34] sm:$0xf]
        %v1542 = vld [vmem:[#allocation7 + $0x38] sm:$0xf]
        %v1543 = vld [vmem:[#allocation7 + $0x3c] sm:$0xf]
        %v1544 = vld [vmem:[#allocation7 + $0x40] sm:$0xf]
        %v1545 = vld [vmem:[#allocation7 + $0x44] sm:$0xf]
        %v1546 = vld [vmem:[#allocation7 + $0x48] sm:$0xf]
        %v1547 = vld [vmem:[#allocation7 + $0x4c] sm:$0xf]
        %v1548 = vld [vmem:[#allocation7 + $0x50] sm:$0xf]
        %v1549 = vld [vmem:[#allocation7 + $0x54] sm:$0xf]
        %v1550 = vld [vmem:[#allocation7 + $0x58] sm:$0xf]
        %v1551 = vld [vmem:[#allocation7 + $0x5c] sm:$0xf]
        %v1552 = vld [vmem:[#allocation7 + $0x60] sm:$0xf]
        %v1553 = vld [vmem:[#allocation7 + $0x64] sm:$0xf]
        %v1554 = vld [vmem:[#allocation7 + $0x68] sm:$0xf]
        %v1555 = vld [vmem:[#allocation7 + $0x6c] sm:$0xf]
        %v1556 = vld [vmem:[#allocation7 + $0x70] sm:$0xf]
        %v1557 = vld [vmem:[#allocation7 + $0x74] sm:$0xf]
        %v1558 = vld [vmem:[#allocation7 + $0x78] sm:$0xf]
        %v1559 = vld [vmem:[#allocation7 + $0x7c] sm:$0xf]
        %v1560 = vld [vmem:[%s1 + $0x2] ss:$0 sm:$0xff]
        %v1593 = vunpack.c.l.b16 %v1528
        %v1594 = vunpack.c.l.b16 %v1529
        %v1595 = vunpack.c.l.b16 %v1530
        %v1596 = vunpack.c.l.b16 %v1531
        %v1597 = vunpack.c.l.b16 %v1532
        %v1598 = vunpack.c.l.b16 %v1533
        %v1599 = vunpack.c.l.b16 %v1534
        %v1600 = vunpack.c.l.b16 %v1535
        %v1601 = vunpack.c.l.b16 %v1536
        %v1602 = vunpack.c.l.b16 %v1537
        %v1603 = vunpack.c.l.b16 %v1538
        %v1604 = vunpack.c.l.b16 %v1539
        %v1605 = vunpack.c.l.b16 %v1540
        %v1606 = vunpack.c.l.b16 %v1541
        %v1607 = vunpack.c.l.b16 %v1542
        %v1608 = vunpack.c.l.b16 %v1543
        %v1609 = vunpack.c.l.b16 %v1544
        %v1610 = vunpack.c.l.b16 %v1545
        %v1611 = vunpack.c.l.b16 %v1546
        %v1612 = vunpack.c.l.b16 %v1547
        %v1613 = vunpack.c.l.b16 %v1548
        %v1614 = vunpack.c.l.b16 %v1549
        %v1615 = vunpack.c.l.b16 %v1550
        %v1616 = vunpack.c.l.b16 %v1551
        %v1617 = vunpack.c.l.b16 %v1552
        %v1618 = vunpack.c.l.b16 %v1553
        %v1619 = vunpack.c.l.b16 %v1554
        %v1620 = vunpack.c.l.b16 %v1555
        %v1621 = vunpack.c.l.b16 %v1556
        %v1622 = vunpack.c.l.b16 %v1557
        %v1623 = vunpack.c.l.b16 %v1558
        %v1624 = vunpack.c.l.b16 %v1559
        %v1625 = vpack.c.b16 %v1594, %v1593
        %v1626 = vpack.c.b16 %v1596, %v1595
        %v1627 = vpack.c.b16 %v1598, %v1597
        %v1628 = vpack.c.b16 %v1600, %v1599
        %v1629 = vpack.c.b16 %v1602, %v1601
        %v1630 = vpack.c.b16 %v1604, %v1603
        %v1631 = vpack.c.b16 %v1606, %v1605
        %v1632 = vpack.c.b16 %v1608, %v1607
        %v1633 = vpack.c.b16 %v1610, %v1609
        %v1634 = vpack.c.b16 %v1612, %v1611
        %v1635 = vpack.c.b16 %v1614, %v1613
        %v1636 = vpack.c.b16 %v1616, %v1615
        %v1637 = vpack.c.b16 %v1618, %v1617
        %v1638 = vpack.c.b16 %v1620, %v1619
        %v1639 = vpack.c.b16 %v1622, %v1621
        %v1640 = vpack.c.b16 %v1624, %v1623
        %1657 = vmatpush.bf16.msra.mxu0 %v1632
        %1658 = vmatpush.bf16.msra.mxu0 %v1631
        %1659 = vmatpush.bf16.msra.mxu0 %v1630
        %1660 = vmatpush.bf16.msra.mxu0 %v1629
        %1661 = vmatpush.bf16.msra.mxu0 %v1628
        %1662 = vmatpush.bf16.msra.mxu0 %v1627
        %1663 = vmatpush.bf16.msra.mxu0 %v1626
        %1664 = vmatpush.bf16.msra.mxu0 %v1625
        %1665 = vmatmul.bf16.gmra.mxu0 %v1526
        %v1666 = vpop.f32.mrf.mxu0
        %v1667 = vadd.f32 %v1560, %v1666
        %v1668 = vpop.f32.mrf.mxu0
        %1669 = vdwg.mxu0
        %1670 = vmatpush.bf16.msra.mxu0 %v1640
        %1671 = vmatpush.bf16.msra.mxu0 %v1639
        %1672 = vmatpush.bf16.msra.mxu0 %v1638
        %1673 = vmatpush.bf16.msra.mxu0 %v1637
        %1674 = vmatpush.bf16.msra.mxu0 %v1636
        %1675 = vmatpush.bf16.msra.mxu0 %v1635
        %1676 = vmatpush.bf16.msra.mxu0 %v1634
        %1677 = vmatpush.bf16.msra.mxu0 %v1633
        %1678 = vmatmul.bf16.gmra.mxu0 %v1527
        %v1679 = vpop.f32.mrf.mxu0
        %v1680 = vadd.f32 %v1667, %v1679
        %v1681 = vpop.f32.mrf.mxu0
        %1682 = vdwg.mxu0
        %v1683 = vmax.f32 %v1680, 0.0
        %v1684 = vpack.c.bf16 %v1683, %v1683
        %v1685 = vld [vmem:[%s5] sm:$0xf]
        %v1686 = vld [vmem:[%s5 + $0x4] sm:$0xf]
        %v1687 = vld [vmem:[%s5 + $0x8] sm:$0xf]
        %v1688 = vld [vmem:[%s5 + $0xc] sm:$0xf]
        %v1689 = vld [vmem:[%s5 + $0x10] sm:$0xf]
        %v1690 = vld [vmem:[%s5 + $0x14] sm:$0xf]
        %v1691 = vld [vmem:[%s5 + $0x18] sm:$0xf]
        %v1692 = vld [vmem:[%s5 + $0x1c] sm:$0xf]
        %v1693 = vld [vmem:[%s5 + $0x20] sm:$0xf]
        %v1694 = vld [vmem:[%s5 + $0x24] sm:$0xf]
        %v1695 = vld [vmem:[%s5 + $0x28] sm:$0xf]
        %v1696 = vld [vmem:[%s5 + $0x2c] sm:$0xf]
        %v1697 = vld [vmem:[%s5 + $0x30] sm:$0xf]
        %v1698 = vld [vmem:[%s5 + $0x34] sm:$0xf]
        %v1699 = vld [vmem:[%s5 + $0x38] sm:$0xf]
        %v1700 = vld [vmem:[%s5 + $0x3c] sm:$0xf]
        %v1701 = vld [vmem:[%s1 + $0x3] ss:$0 sm:$0xff]
        %v1718 = vunpack.c.l.b16 %v1685
        %v1719 = vunpack.c.l.b16 %v1686
        %v1720 = vunpack.c.l.b16 %v1687
        %v1721 = vunpack.c.l.b16 %v1688
        %v1722 = vunpack.c.l.b16 %v1689
        %v1723 = vunpack.c.l.b16 %v1690
        %v1724 = vunpack.c.l.b16 %v1691
        %v1725 = vunpack.c.l.b16 %v1692
        %v1726 = vunpack.c.l.b16 %v1693
        %v1727 = vunpack.c.l.b16 %v1694
        %v1728 = vunpack.c.l.b16 %v1695
        %v1729 = vunpack.c.l.b16 %v1696
        %v1730 = vunpack.c.l.b16 %v1697
        %v1731 = vunpack.c.l.b16 %v1698
        %v1732 = vunpack.c.l.b16 %v1699
        %v1733 = vunpack.c.l.b16 %v1700
        %v1734 = vpack.c.b16 %v1719, %v1718
        %v1735 = vpack.c.b16 %v1721, %v1720
        %v1736 = vpack.c.b16 %v1723, %v1722
        %v1737 = vpack.c.b16 %v1725, %v1724
        %v1738 = vpack.c.b16 %v1727, %v1726
        %v1739 = vpack.c.b16 %v1729, %v1728
        %v1740 = vpack.c.b16 %v1731, %v1730
        %v1741 = vpack.c.b16 %v1733, %v1732
        %1750 = vmatpush.bf16.msra.mxu0 %v1741
        %1751 = vmatpush.bf16.msra.mxu0 %v1740
        %1752 = vmatpush.bf16.msra.mxu0 %v1739
        %1753 = vmatpush.bf16.msra.mxu0 %v1738
        %1754 = vmatpush.bf16.msra.mxu0 %v1737
        %1755 = vmatpush.bf16.msra.mxu0 %v1736
        %1756 = vmatpush.bf16.msra.mxu0 %v1735
        %1757 = vmatpush.bf16.msra.mxu0 %v1734
        %1758 = vmatmul.bf16.gmra.mxu0 %v1684
        %v1759 = vpop.f32.mrf.mxu0
        %v1760 = vadd.f32 %v1701, %v1759
        %v1761 = vpop.f32.mrf.mxu0
        %1762 = vdwg.mxu0
        %v1763 = vmax.f32 %v1760, 0.0
        %v1764 = vpack.c.bf16 %v1763, %v1763
        %v1765 = vld [vmem:[#allocation8] sm:$0xf]
        %v1766 = vld [vmem:[#allocation8 + $0x4] sm:$0xf]
        %v1767 = vld [vmem:[#allocation8 + $0x8] sm:$0xf]
        %v1768 = vld [vmem:[#allocation8 + $0xc] sm:$0xf]
        %v1769 = vld [vmem:[#allocation8 + $0x10] sm:$0xf]
        %v1770 = vld [vmem:[#allocation8 + $0x14] sm:$0xf]
        %v1771 = vld [vmem:[#allocation8 + $0x18] sm:$0xf]
        %v1772 = vld [vmem:[#allocation8 + $0x1c] sm:$0xf]
        %v1773 = vld [vmem:[%s1 + $0x4] ss:$0 sm:$0xff]
        %v1782 = vunpack.c.l.b16 %v1765
        %v1783 = vunpack.c.l.b16 %v1766
        %v1784 = vunpack.c.l.b16 %v1767
        %v1785 = vunpack.c.l.b16 %v1768
        %v1786 = vunpack.c.l.b16 %v1769
        %v1787 = vunpack.c.l.b16 %v1770
        %v1788 = vunpack.c.l.b16 %v1771
        %v1789 = vunpack.c.l.b16 %v1772
        %v1790 = vpack.c.b16 %v1783, %v1782
        %v1791 = vpack.c.b16 %v1785, %v1784
        %v1792 = vpack.c.b16 %v1787, %v1786
        %v1793 = vpack.c.b16 %v1789, %v1788
        %vm1798 = vcmask 523264
        %v1800 = vsel %vm1798, %v1764, 0
        %1802 = vmatpush.bf16.msra.mxu0 0
        %1803 = vmatpush.bf16.msra.mxu0 0
        %1804 = vmatpush.bf16.msra.mxu0 0
        %1805 = vmatpush.bf16.msra.mxu0 0
        %1806 = vmatpush.bf16.msra.mxu0 %v1793
        %1807 = vmatpush.bf16.msra.mxu0 %v1792
        %1808 = vmatpush.bf16.msra.mxu0 %v1791
        %1809 = vmatpush.bf16.msra.mxu0 %v1790
        %1810 = vmatmul.bf16.gmra.mxu0 %v1800
        %v1811 = vpop.f32.mrf.mxu0
        %v1812 = vadd.f32 %v1773, %v1811
        %v1813 = vpop.f32.mrf.mxu0
        %1814 = vdwg.mxu0
        %v1815 = vmax.f32 %v1812, 0.0
        %v1816 = vpack.c.bf16 %v1815, %v1815
        %v1817 = vld [vmem:[#allocation10] sm:$0xf]
        %v1818 = vld [vmem:[#allocation10 + $0x4] sm:$0xf]
        %v1819 = vld [vmem:[#allocation10 + $0x8] sm:$0xf]
        %v1820 = vld [vmem:[#allocation10 + $0xc] sm:$0xf]
        %v1821 = vld [vmem:[#allocation10 + $0x10] sm:$0xf]
        %v1822 = vld [vmem:[#allocation10 + $0x14] sm:$0xf]
        %v1823 = vld [vmem:[#allocation10 + $0x18] sm:$0xf]
        %v1824 = vld [vmem:[#allocation10 + $0x1c] sm:$0xf]
        %v1825 = vld [vmem:[%s1 + $0x5] ss:$0 sm:$0xff]
        %v1834 = vunpack.c.l.b16 %v1817
        %v1835 = vunpack.c.l.b16 %v1818
        %v1836 = vunpack.c.l.b16 %v1819
        %v1837 = vunpack.c.l.b16 %v1820
        %v1838 = vunpack.c.l.b16 %v1821
        %v1839 = vunpack.c.l.b16 %v1822
        %v1840 = vunpack.c.l.b16 %v1823
        %v1841 = vunpack.c.l.b16 %v1824
        %v1842 = vpack.c.b16 %v1835, %v1834
        %v1843 = vpack.c.b16 %v1837, %v1836
        %v1844 = vpack.c.b16 %v1839, %v1838
        %v1845 = vpack.c.b16 %v1841, %v1840
        %v1851 = vsel %vm1798, %v1816, 0
        %1853 = vmatpush.bf16.msra.mxu0 0
        %1854 = vmatpush.bf16.msra.mxu0 0
        %1855 = vmatpush.bf16.msra.mxu0 0
        %1856 = vmatpush.bf16.msra.mxu0 0
        %1857 = vmatpush.bf16.msra.mxu0 %v1845
        %1858 = vmatpush.bf16.msra.mxu0 %v1844
        %1859 = vmatpush.bf16.msra.mxu0 %v1843
        %1860 = vmatpush.bf16.msra.mxu0 %v1842
        %1861 = vmatmul.bf16.gmra.mxu0 %v1851
        %v1862 = vpop.f32.mrf.mxu0
        %v1863 = vadd.f32 %v1825, %v1862
        %v1864 = vpop.f32.mrf.mxu0
        %1865 = vdwg.mxu0
        %v1866 = vmax.f32 %v1863, 0.0
        %v1867 = vpack.c.bf16 %v1866, %v1866
        %v1868 = vld [vmem:[#allocation11] sm:$0xff]
        %v1869 = vld [vmem:[#allocation11 + $0x8] sm:$0xff]
        %v1870 = vld [vmem:[#allocation11 + $0x10] sm:$0xff]
        %v1871 = vld [vmem:[#allocation11 + $0x18] sm:$0xff]
        %v1872 = vld [vmem:[#allocation11 + $0x20] sm:$0xff]
        %v1873 = vld [vmem:[#allocation11 + $0x28] sm:$0xff]
        %v1874 = vld [vmem:[#allocation11 + $0x30] sm:$0xff]
        %v1875 = vld [vmem:[#allocation11 + $0x38] sm:$0xff]
        %v1876 = vld [vmem:[#allocation11 + $0x40] sm:$0xff]
        %v1877 = vld [vmem:[#allocation11 + $0x48] sm:$0xff]
        %v1878 = vld [vmem:[#allocation11 + $0x50] sm:$0xff]
        %v1879 = vld [vmem:[#allocation11 + $0x58] sm:$0xff]
        %v1880 = vld [vmem:[#allocation11 + $0x60] sm:$0xff]
        %v1881 = vld [vmem:[#allocation11 + $0x68] sm:$0xff]
        %v1882 = vld [vmem:[#allocation11 + $0x70] sm:$0xff]
        %v1883 = vld [vmem:[#allocation11 + $0x78] sm:$0xff]
        %s1884 = scalar_lea.vmem %s1, 6
        %v1885 = vld [vmem:[%s1884] ss:$8 sm:$0x3]
        %v1887 = vperm.slane %v1885, 0
        %v1888 = vperm.slane %v1885, 1
        %v1907 = vunpack.c.l.b16 %v1868
        %v1908 = vunpack.c.h.b16 %v1868
        %v1909 = vunpack.c.l.b16 %v1869
        %v1910 = vunpack.c.h.b16 %v1869
        %v1911 = vunpack.c.l.b16 %v1870
        %v1912 = vunpack.c.h.b16 %v1870
        %v1913 = vunpack.c.l.b16 %v1871
        %v1914 = vunpack.c.h.b16 %v1871
        %v1915 = vunpack.c.l.b16 %v1872
        %v1916 = vunpack.c.h.b16 %v1872
        %v1917 = vunpack.c.l.b16 %v1873
        %v1918 = vunpack.c.h.b16 %v1873
        %v1919 = vunpack.c.l.b16 %v1874
        %v1920 = vunpack.c.h.b16 %v1874
        %v1921 = vunpack.c.l.b16 %v1875
        %v1922 = vunpack.c.h.b16 %v1875
        %v1923 = vunpack.c.l.b16 %v1876
        %v1924 = vunpack.c.h.b16 %v1876
        %v1925 = vunpack.c.l.b16 %v1877
        %v1926 = vunpack.c.h.b16 %v1877
        %v1927 = vunpack.c.l.b16 %v1878
        %v1928 = vunpack.c.h.b16 %v1878
        %v1929 = vunpack.c.l.b16 %v1879
        %v1930 = vunpack.c.h.b16 %v1879
        %v1931 = vunpack.c.l.b16 %v1880
        %v1932 = vunpack.c.h.b16 %v1880
        %v1933 = vunpack.c.l.b16 %v1881
        %v1934 = vunpack.c.h.b16 %v1881
        %v1935 = vunpack.c.l.b16 %v1882
        %v1936 = vunpack.c.h.b16 %v1882
        %v1937 = vunpack.c.l.b16 %v1883
        %v1938 = vunpack.c.h.b16 %v1883
        %v1939 = vpack.c.b16 %v1909, %v1907
        %v1940 = vpack.c.b16 %v1910, %v1908
        %v1941 = vpack.c.b16 %v1913, %v1911
        %v1942 = vpack.c.b16 %v1914, %v1912
        %v1943 = vpack.c.b16 %v1917, %v1915
        %v1944 = vpack.c.b16 %v1918, %v1916
        %v1945 = vpack.c.b16 %v1921, %v1919
        %v1946 = vpack.c.b16 %v1922, %v1920
        %v1947 = vpack.c.b16 %v1925, %v1923
        %v1948 = vpack.c.b16 %v1926, %v1924
        %v1949 = vpack.c.b16 %v1929, %v1927
        %v1950 = vpack.c.b16 %v1930, %v1928
        %v1951 = vpack.c.b16 %v1933, %v1931
        %v1952 = vpack.c.b16 %v1934, %v1932
        %v1953 = vpack.c.b16 %v1937, %v1935
        %v1954 = vpack.c.b16 %v1938, %v1936
        %1971 = vmatpush.bf16.msra.mxu0 %v1953
        %1972 = vmatpush.bf16.msra.mxu0 %v1951
        %1973 = vmatpush.bf16.msra.mxu0 %v1949
        %1974 = vmatpush.bf16.msra.mxu0 %v1947
        %1975 = vmatpush.bf16.msra.mxu0 %v1945
        %1976 = vmatpush.bf16.msra.mxu0 %v1943
        %1977 = vmatpush.bf16.msra.mxu0 %v1941
        %1978 = vmatpush.bf16.msra.mxu0 %v1939
        %1979 = vmatmul.bf16.gmra.mxu0 %v1867
        %v1980 = vpop.f32.mrf.mxu0
        %v1981 = vadd.f32 %v1887, %v1980
        %v1982 = vpop.f32.mrf.mxu0
        %1983 = vdwg.mxu0
        %1984 = vmatpush.bf16.msra.mxu0 %v1954
        %1985 = vmatpush.bf16.msra.mxu0 %v1952
        %1986 = vmatpush.bf16.msra.mxu0 %v1950
        %1987 = vmatpush.bf16.msra.mxu0 %v1948
        %1988 = vmatpush.bf16.msra.mxu0 %v1946
        %1989 = vmatpush.bf16.msra.mxu0 %v1944
        %1990 = vmatpush.bf16.msra.mxu0 %v1942
        %1991 = vmatpush.bf16.msra.mxu0 %v1940
        %1992 = vmatmul.bf16.gmra.mxu0 %v1867
        %v1993 = vpop.f32.mrf.mxu0
        %v1994 = vadd.f32 %v1888, %v1993
        %v1995 = vpop.f32.mrf.mxu0
        %1996 = vdwg.mxu0
        %v1997 = vmax.f32 %v1981, 0.0
        %v1998 = vmax.f32 %v1994, 0.0
        %v1999 = vpack.c.bf16 %v1997, %v1997
        %v2000 = vpack.c.bf16 %v1998, %v1998
        %v2001 = vld [vmem:[#allocation13] sm:$0xff]
        %v2002 = vld [vmem:[#allocation13 + $0x8] sm:$0xff]
        %v2003 = vld [vmem:[#allocation13 + $0x10] sm:$0xff]
        %v2004 = vld [vmem:[#allocation13 + $0x18] sm:$0xff]
        %v2005 = vld [vmem:[#allocation13 + $0x20] sm:$0xff]
        %v2006 = vld [vmem:[#allocation13 + $0x28] sm:$0xff]
        %v2007 = vld [vmem:[#allocation13 + $0x30] sm:$0xff]
        %v2008 = vld [vmem:[#allocation13 + $0x38] sm:$0xff]
        %v2009 = vld [vmem:[#allocation13 + $0x40] sm:$0xff]
        %v2010 = vld [vmem:[#allocation13 + $0x48] sm:$0xff]
        %v2011 = vld [vmem:[#allocation13 + $0x50] sm:$0xff]
        %v2012 = vld [vmem:[#allocation13 + $0x58] sm:$0xff]
        %v2013 = vld [vmem:[#allocation13 + $0x60] sm:$0xff]
        %v2014 = vld [vmem:[#allocation13 + $0x68] sm:$0xff]
        %v2015 = vld [vmem:[#allocation13 + $0x70] sm:$0xff]
        %v2016 = vld [vmem:[#allocation13 + $0x78] sm:$0xff]
        %v2017 = vld [vmem:[#allocation13 + $0x80] sm:$0xff]
        %v2018 = vld [vmem:[#allocation13 + $0x88] sm:$0xff]
        %v2019 = vld [vmem:[#allocation13 + $0x90] sm:$0xff]
        %v2020 = vld [vmem:[#allocation13 + $0x98] sm:$0xff]
        %v2021 = vld [vmem:[#allocation13 + $0xa0] sm:$0xff]
        %v2022 = vld [vmem:[#allocation13 + $0xa8] sm:$0xff]
        %v2023 = vld [vmem:[#allocation13 + $0xb0] sm:$0xff]
        %v2024 = vld [vmem:[#allocation13 + $0xb8] sm:$0xff]
        %v2025 = vld [vmem:[#allocation13 + $0xc0] sm:$0xff]
        %v2026 = vld [vmem:[#allocation13 + $0xc8] sm:$0xff]
        %v2027 = vld [vmem:[#allocation13 + $0xd0] sm:$0xff]
        %v2028 = vld [vmem:[#allocation13 + $0xd8] sm:$0xff]
        %v2029 = vld [vmem:[#allocation13 + $0xe0] sm:$0xff]
        %v2030 = vld [vmem:[#allocation13 + $0xe8] sm:$0xff]
        %v2031 = vld [vmem:[#allocation13 + $0xf0] sm:$0xff]
        %v2032 = vld [vmem:[#allocation13 + $0xf8] sm:$0xff]
        %v2033 = vld [vmem:[#allocation13 + $0x100] sm:$0xff]
        %v2034 = vld [vmem:[#allocation13 + $0x108] sm:$0xff]
        %v2035 = vld [vmem:[#allocation13 + $0x110] sm:$0xff]
        %v2036 = vld [vmem:[#allocation13 + $0x118] sm:$0xff]
        %v2037 = vld [vmem:[#allocation13 + $0x120] sm:$0xff]
        %v2038 = vld [vmem:[#allocation13 + $0x128] sm:$0xff]
        %v2039 = vld [vmem:[#allocation13 + $0x130] sm:$0xff]
        %v2040 = vld [vmem:[#allocation13 + $0x138] sm:$0xff]
        %v2041 = vld [vmem:[#allocation13 + $0x140] sm:$0xff]
        %v2042 = vld [vmem:[#allocation13 + $0x148] sm:$0xff]
        %v2043 = vld [vmem:[#allocation13 + $0x150] sm:$0xff]
        %v2044 = vld [vmem:[#allocation13 + $0x158] sm:$0xff]
        %v2045 = vld [vmem:[#allocation13 + $0x160] sm:$0xff]
        %v2046 = vld [vmem:[#allocation13 + $0x168] sm:$0xff]
        %v2047 = vld [vmem:[#allocation13 + $0x170] sm:$0xff]
        %v2048 = vld [vmem:[#allocation13 + $0x178] sm:$0xff]
        %v2049 = vld [vmem:[#allocation13 + $0x180] sm:$0xff]
        %v2050 = vld [vmem:[#allocation13 + $0x188] sm:$0xff]
        %v2051 = vld [vmem:[#allocation13 + $0x190] sm:$0xff]
        %v2052 = vld [vmem:[#allocation13 + $0x198] sm:$0xff]
        %v2053 = vld [vmem:[#allocation13 + $0x1a0] sm:$0xff]
        %v2054 = vld [vmem:[#allocation13 + $0x1a8] sm:$0xff]
        %v2055 = vld [vmem:[#allocation13 + $0x1b0] sm:$0xff]
        %v2056 = vld [vmem:[#allocation13 + $0x1b8] sm:$0xff]
        %v2057 = vld [vmem:[#allocation13 + $0x1c0] sm:$0xff]
        %v2058 = vld [vmem:[#allocation13 + $0x1c8] sm:$0xff]
        %v2059 = vld [vmem:[#allocation13 + $0x1d0] sm:$0xff]
        %v2060 = vld [vmem:[#allocation13 + $0x1d8] sm:$0xff]
        %v2061 = vld [vmem:[#allocation13 + $0x1e0] sm:$0xff]
        %v2062 = vld [vmem:[#allocation13 + $0x1e8] sm:$0xff]
        %v2063 = vld [vmem:[#allocation13 + $0x1f0] sm:$0xff]
        %v2064 = vld [vmem:[#allocation13 + $0x1f8] sm:$0xff]
        %s2065 = scalar_lea.vmem %s1, 7
        %v2066 = vld [vmem:[%s2065] ss:$8 sm:$0xf]
        %v2068 = vperm.slane %v2066, 0
        %v2069 = vperm.slane %v2066, 1
        %v2070 = vperm.slane %v2066, 2
        %v2071 = vperm.slane %v2066, 3
        %v2140 = vunpack.c.l.b16 %v2001
        %v2141 = vunpack.c.h.b16 %v2001
        %v2142 = vunpack.c.l.b16 %v2002
        %v2143 = vunpack.c.h.b16 %v2002
        %v2144 = vunpack.c.l.b16 %v2003
        %v2145 = vunpack.c.h.b16 %v2003
        %v2146 = vunpack.c.l.b16 %v2004
        %v2147 = vunpack.c.h.b16 %v2004
        %v2148 = vunpack.c.l.b16 %v2005
        %v2149 = vunpack.c.h.b16 %v2005
        %v2150 = vunpack.c.l.b16 %v2006
        %v2151 = vunpack.c.h.b16 %v2006
        %v2152 = vunpack.c.l.b16 %v2007
        %v2153 = vunpack.c.h.b16 %v2007
        %v2154 = vunpack.c.l.b16 %v2008
        %v2155 = vunpack.c.h.b16 %v2008
        %v2156 = vunpack.c.l.b16 %v2009
        %v2157 = vunpack.c.h.b16 %v2009
        %v2158 = vunpack.c.l.b16 %v2010
        %v2159 = vunpack.c.h.b16 %v2010
        %v2160 = vunpack.c.l.b16 %v2011
        %v2161 = vunpack.c.h.b16 %v2011
        %v2162 = vunpack.c.l.b16 %v2012
        %v2163 = vunpack.c.h.b16 %v2012
        %v2164 = vunpack.c.l.b16 %v2013
        %v2165 = vunpack.c.h.b16 %v2013
        %v2166 = vunpack.c.l.b16 %v2014
        %v2167 = vunpack.c.h.b16 %v2014
        %v2168 = vunpack.c.l.b16 %v2015
        %v2169 = vunpack.c.h.b16 %v2015
        %v2170 = vunpack.c.l.b16 %v2016
        %v2171 = vunpack.c.h.b16 %v2016
        %v2172 = vunpack.c.l.b16 %v2017
        %v2173 = vunpack.c.h.b16 %v2017
        %v2174 = vunpack.c.l.b16 %v2018
        %v2175 = vunpack.c.h.b16 %v2018
        %v2176 = vunpack.c.l.b16 %v2019
        %v2177 = vunpack.c.h.b16 %v2019
        %v2178 = vunpack.c.l.b16 %v2020
        %v2179 = vunpack.c.h.b16 %v2020
        %v2180 = vunpack.c.l.b16 %v2021
        %v2181 = vunpack.c.h.b16 %v2021
        %v2182 = vunpack.c.l.b16 %v2022
        %v2183 = vunpack.c.h.b16 %v2022
        %v2184 = vunpack.c.l.b16 %v2023
        %v2185 = vunpack.c.h.b16 %v2023
        %v2186 = vunpack.c.l.b16 %v2024
        %v2187 = vunpack.c.h.b16 %v2024
        %v2188 = vunpack.c.l.b16 %v2025
        %v2189 = vunpack.c.h.b16 %v2025
        %v2190 = vunpack.c.l.b16 %v2026
        %v2191 = vunpack.c.h.b16 %v2026
        %v2192 = vunpack.c.l.b16 %v2027
        %v2193 = vunpack.c.h.b16 %v2027
        %v2194 = vunpack.c.l.b16 %v2028
        %v2195 = vunpack.c.h.b16 %v2028
        %v2196 = vunpack.c.l.b16 %v2029
        %v2197 = vunpack.c.h.b16 %v2029
        %v2198 = vunpack.c.l.b16 %v2030
        %v2199 = vunpack.c.h.b16 %v2030
        %v2200 = vunpack.c.l.b16 %v2031
        %v2201 = vunpack.c.h.b16 %v2031
        %v2202 = vunpack.c.l.b16 %v2032
        %v2203 = vunpack.c.h.b16 %v2032
        %v2204 = vunpack.c.l.b16 %v2033
        %v2205 = vunpack.c.h.b16 %v2033
        %v2206 = vunpack.c.l.b16 %v2034
        %v2207 = vunpack.c.h.b16 %v2034
        %v2208 = vunpack.c.l.b16 %v2035
        %v2209 = vunpack.c.h.b16 %v2035
        %v2210 = vunpack.c.l.b16 %v2036
        %v2211 = vunpack.c.h.b16 %v2036
        %v2212 = vunpack.c.l.b16 %v2037
        %v2213 = vunpack.c.h.b16 %v2037
        %v2214 = vunpack.c.l.b16 %v2038
        %v2215 = vunpack.c.h.b16 %v2038
        %v2216 = vunpack.c.l.b16 %v2039
        %v2217 = vunpack.c.h.b16 %v2039
        %v2218 = vunpack.c.l.b16 %v2040
        %v2219 = vunpack.c.h.b16 %v2040
        %v2220 = vunpack.c.l.b16 %v2041
        %v2221 = vunpack.c.h.b16 %v2041
        %v2222 = vunpack.c.l.b16 %v2042
        %v2223 = vunpack.c.h.b16 %v2042
        %v2224 = vunpack.c.l.b16 %v2043
        %v2225 = vunpack.c.h.b16 %v2043
        %v2226 = vunpack.c.l.b16 %v2044
        %v2227 = vunpack.c.h.b16 %v2044
        %v2228 = vunpack.c.l.b16 %v2045
        %v2229 = vunpack.c.h.b16 %v2045
        %v2230 = vunpack.c.l.b16 %v2046
        %v2231 = vunpack.c.h.b16 %v2046
        %v2232 = vunpack.c.l.b16 %v2047
        %v2233 = vunpack.c.h.b16 %v2047
        %v2234 = vunpack.c.l.b16 %v2048
        %v2235 = vunpack.c.h.b16 %v2048
        %v2236 = vunpack.c.l.b16 %v2049
        %v2237 = vunpack.c.h.b16 %v2049
        %v2238 = vunpack.c.l.b16 %v2050
        %v2239 = vunpack.c.h.b16 %v2050
        %v2240 = vunpack.c.l.b16 %v2051
        %v2241 = vunpack.c.h.b16 %v2051
        %v2242 = vunpack.c.l.b16 %v2052
        %v2243 = vunpack.c.h.b16 %v2052
        %v2244 = vunpack.c.l.b16 %v2053
        %v2245 = vunpack.c.h.b16 %v2053
        %v2246 = vunpack.c.l.b16 %v2054
        %v2247 = vunpack.c.h.b16 %v2054
        %v2248 = vunpack.c.l.b16 %v2055
        %v2249 = vunpack.c.h.b16 %v2055
        %v2250 = vunpack.c.l.b16 %v2056
        %v2251 = vunpack.c.h.b16 %v2056
        %v2252 = vunpack.c.l.b16 %v2057
        %v2253 = vunpack.c.h.b16 %v2057
        %v2254 = vunpack.c.l.b16 %v2058
        %v2255 = vunpack.c.h.b16 %v2058
        %v2256 = vunpack.c.l.b16 %v2059
        %v2257 = vunpack.c.h.b16 %v2059
        %v2258 = vunpack.c.l.b16 %v2060
        %v2259 = vunpack.c.h.b16 %v2060
        %v2260 = vunpack.c.l.b16 %v2061
        %v2261 = vunpack.c.h.b16 %v2061
        %v2262 = vunpack.c.l.b16 %v2062
        %v2263 = vunpack.c.h.b16 %v2062
        %v2264 = vunpack.c.l.b16 %v2063
        %v2265 = vunpack.c.h.b16 %v2063
        %v2266 = vunpack.c.l.b16 %v2064
        %v2267 = vunpack.c.h.b16 %v2064
        %v2268 = vpack.c.b16 %v2144, %v2140
        %v2269 = vpack.c.b16 %v2145, %v2141
        %v2270 = vpack.c.b16 %v2146, %v2142
        %v2271 = vpack.c.b16 %v2147, %v2143
        %v2272 = vpack.c.b16 %v2152, %v2148
        %v2273 = vpack.c.b16 %v2153, %v2149
        %v2274 = vpack.c.b16 %v2154, %v2150
        %v2275 = vpack.c.b16 %v2155, %v2151
        %v2276 = vpack.c.b16 %v2160, %v2156
        %v2277 = vpack.c.b16 %v2161, %v2157
        %v2278 = vpack.c.b16 %v2162, %v2158
        %v2279 = vpack.c.b16 %v2163, %v2159
        %v2280 = vpack.c.b16 %v2168, %v2164
        %v2281 = vpack.c.b16 %v2169, %v2165
        %v2282 = vpack.c.b16 %v2170, %v2166
        %v2283 = vpack.c.b16 %v2171, %v2167
        %v2284 = vpack.c.b16 %v2176, %v2172
        %v2285 = vpack.c.b16 %v2177, %v2173
        %v2286 = vpack.c.b16 %v2178, %v2174
        %v2287 = vpack.c.b16 %v2179, %v2175
        %v2288 = vpack.c.b16 %v2184, %v2180
        %v2289 = vpack.c.b16 %v2185, %v2181
        %v2290 = vpack.c.b16 %v2186, %v2182
        %v2291 = vpack.c.b16 %v2187, %v2183
        %v2292 = vpack.c.b16 %v2192, %v2188
        %v2293 = vpack.c.b16 %v2193, %v2189
        %v2294 = vpack.c.b16 %v2194, %v2190
        %v2295 = vpack.c.b16 %v2195, %v2191
        %v2296 = vpack.c.b16 %v2200, %v2196
        %v2297 = vpack.c.b16 %v2201, %v2197
        %v2298 = vpack.c.b16 %v2202, %v2198
        %v2299 = vpack.c.b16 %v2203, %v2199
        %v2300 = vpack.c.b16 %v2208, %v2204
        %v2301 = vpack.c.b16 %v2209, %v2205
        %v2302 = vpack.c.b16 %v2210, %v2206
        %v2303 = vpack.c.b16 %v2211, %v2207
        %v2304 = vpack.c.b16 %v2216, %v2212
        %v2305 = vpack.c.b16 %v2217, %v2213
        %v2306 = vpack.c.b16 %v2218, %v2214
        %v2307 = vpack.c.b16 %v2219, %v2215
        %v2308 = vpack.c.b16 %v2224, %v2220
        %v2309 = vpack.c.b16 %v2225, %v2221
        %v2310 = vpack.c.b16 %v2226, %v2222
        %v2311 = vpack.c.b16 %v2227, %v2223
        %v2312 = vpack.c.b16 %v2232, %v2228
        %v2313 = vpack.c.b16 %v2233, %v2229
        %v2314 = vpack.c.b16 %v2234, %v2230
        %v2315 = vpack.c.b16 %v2235, %v2231
        %v2316 = vpack.c.b16 %v2240, %v2236
        %v2317 = vpack.c.b16 %v2241, %v2237
        %v2318 = vpack.c.b16 %v2242, %v2238
        %v2319 = vpack.c.b16 %v2243, %v2239
        %v2320 = vpack.c.b16 %v2248, %v2244
        %v2321 = vpack.c.b16 %v2249, %v2245
        %v2322 = vpack.c.b16 %v2250, %v2246
        %v2323 = vpack.c.b16 %v2251, %v2247
        %v2324 = vpack.c.b16 %v2256, %v2252
        %v2325 = vpack.c.b16 %v2257, %v2253
        %v2326 = vpack.c.b16 %v2258, %v2254
        %v2327 = vpack.c.b16 %v2259, %v2255
        %v2328 = vpack.c.b16 %v2264, %v2260
        %v2329 = vpack.c.b16 %v2265, %v2261
        %v2330 = vpack.c.b16 %v2266, %v2262
        %v2331 = vpack.c.b16 %v2267, %v2263
        %2396 = vmatpush.bf16.msra.mxu0 %v2296
        %2397 = vmatpush.bf16.msra.mxu0 %v2292
        %2398 = vmatpush.bf16.msra.mxu0 %v2288
        %2399 = vmatpush.bf16.msra.mxu0 %v2284
        %2400 = vmatpush.bf16.msra.mxu0 %v2280
        %2401 = vmatpush.bf16.msra.mxu0 %v2276
        %2402 = vmatpush.bf16.msra.mxu0 %v2272
        %2403 = vmatpush.bf16.msra.mxu0 %v2268
        %2404 = vmatmul.bf16.gmra.mxu0 %v1999
        %v2405 = vpop.f32.mrf.mxu0
        %v2406 = vadd.f32 %v2068, %v2405
        %v2407 = vpop.f32.mrf.mxu0
        %2408 = vdwg.mxu0
        %2409 = vmatpush.bf16.msra.mxu0 %v2328
        %2410 = vmatpush.bf16.msra.mxu0 %v2324
        %2411 = vmatpush.bf16.msra.mxu0 %v2320
        %2412 = vmatpush.bf16.msra.mxu0 %v2316
        %2413 = vmatpush.bf16.msra.mxu0 %v2312
        %2414 = vmatpush.bf16.msra.mxu0 %v2308
        %2415 = vmatpush.bf16.msra.mxu0 %v2304
        %2416 = vmatpush.bf16.msra.mxu0 %v2300
        %2417 = vmatmul.bf16.gmra.mxu0 %v2000
        %v2418 = vpop.f32.mrf.mxu0
        %v2419 = vadd.f32 %v2406, %v2418
        %v2420 = vpop.f32.mrf.mxu0
        %2421 = vdwg.mxu0
        %2422 = vmatpush.bf16.msra.mxu0 %v2297
        %2423 = vmatpush.bf16.msra.mxu0 %v2293
        %2424 = vmatpush.bf16.msra.mxu0 %v2289
        %2425 = vmatpush.bf16.msra.mxu0 %v2285
        %2426 = vmatpush.bf16.msra.mxu0 %v2281
        %2427 = vmatpush.bf16.msra.mxu0 %v2277
        %2428 = vmatpush.bf16.msra.mxu0 %v2273
        %2429 = vmatpush.bf16.msra.mxu0 %v2269
        %2430 = vmatmul.bf16.gmra.mxu0 %v1999
        %v2431 = vpop.f32.mrf.mxu0
        %v2432 = vadd.f32 %v2069, %v2431
        %v2433 = vpop.f32.mrf.mxu0
        %2434 = vdwg.mxu0
        %2435 = vmatpush.bf16.msra.mxu0 %v2329
        %2436 = vmatpush.bf16.msra.mxu0 %v2325
        %2437 = vmatpush.bf16.msra.mxu0 %v2321
        %2438 = vmatpush.bf16.msra.mxu0 %v2317
        %2439 = vmatpush.bf16.msra.mxu0 %v2313
        %2440 = vmatpush.bf16.msra.mxu0 %v2309
        %2441 = vmatpush.bf16.msra.mxu0 %v2305
        %2442 = vmatpush.bf16.msra.mxu0 %v2301
        %2443 = vmatmul.bf16.gmra.mxu0 %v2000
        %v2444 = vpop.f32.mrf.mxu0
        %v2445 = vadd.f32 %v2432, %v2444
        %v2446 = vpop.f32.mrf.mxu0
        %2447 = vdwg.mxu0
        %2448 = vmatpush.bf16.msra.mxu0 %v2298
        %2449 = vmatpush.bf16.msra.mxu0 %v2294
        %2450 = vmatpush.bf16.msra.mxu0 %v2290
        %2451 = vmatpush.bf16.msra.mxu0 %v2286
        %2452 = vmatpush.bf16.msra.mxu0 %v2282
        %2453 = vmatpush.bf16.msra.mxu0 %v2278
        %2454 = vmatpush.bf16.msra.mxu0 %v2274
        %2455 = vmatpush.bf16.msra.mxu0 %v2270
        %2456 = vmatmul.bf16.gmra.mxu0 %v1999
        %v2457 = vpop.f32.mrf.mxu0
        %v2458 = vadd.f32 %v2070, %v2457
        %v2459 = vpop.f32.mrf.mxu0
        %2460 = vdwg.mxu0
        %2461 = vmatpush.bf16.msra.mxu0 %v2330
        %2462 = vmatpush.bf16.msra.mxu0 %v2326
        %2463 = vmatpush.bf16.msra.mxu0 %v2322
        %2464 = vmatpush.bf16.msra.mxu0 %v2318
        %2465 = vmatpush.bf16.msra.mxu0 %v2314
        %2466 = vmatpush.bf16.msra.mxu0 %v2310
        %2467 = vmatpush.bf16.msra.mxu0 %v2306
        %2468 = vmatpush.bf16.msra.mxu0 %v2302
        %2469 = vmatmul.bf16.gmra.mxu0 %v2000
        %v2470 = vpop.f32.mrf.mxu0
        %v2471 = vadd.f32 %v2458, %v2470
        %v2472 = vpop.f32.mrf.mxu0
        %2473 = vdwg.mxu0
        %2474 = vmatpush.bf16.msra.mxu0 %v2299
        %2475 = vmatpush.bf16.msra.mxu0 %v2295
        %2476 = vmatpush.bf16.msra.mxu0 %v2291
        %2477 = vmatpush.bf16.msra.mxu0 %v2287
        %2478 = vmatpush.bf16.msra.mxu0 %v2283
        %2479 = vmatpush.bf16.msra.mxu0 %v2279
        %2480 = vmatpush.bf16.msra.mxu0 %v2275
        %2481 = vmatpush.bf16.msra.mxu0 %v2271
        %2482 = vmatmul.bf16.gmra.mxu0 %v1999
        %v2483 = vpop.f32.mrf.mxu0
        %v2484 = vadd.f32 %v2071, %v2483
        %v2485 = vpop.f32.mrf.mxu0
        %2486 = vdwg.mxu0
        %2487 = vmatpush.bf16.msra.mxu0 %v2331
        %2488 = vmatpush.bf16.msra.mxu0 %v2327
        %2489 = vmatpush.bf16.msra.mxu0 %v2323
        %2490 = vmatpush.bf16.msra.mxu0 %v2319
        %2491 = vmatpush.bf16.msra.mxu0 %v2315
        %2492 = vmatpush.bf16.msra.mxu0 %v2311
        %2493 = vmatpush.bf16.msra.mxu0 %v2307
        %2494 = vmatpush.bf16.msra.mxu0 %v2303
        %2495 = vmatmul.bf16.gmra.mxu0 %v2000
        %v2496 = vpop.f32.mrf.mxu0
        %v2497 = vadd.f32 %v2484, %v2496
        %v2498 = vpop.f32.mrf.mxu0
        %2499 = vdwg.mxu0
        %v2500 = vmax.f32 %v2419, 0.0
        %v2501 = vmax.f32 %v2445, 0.0
        %v2502 = vmax.f32 %v2471, 0.0
        %v2503 = vmax.f32 %v2497, 0.0
        %v2504 = vpack.c.bf16 %v2500, %v2500
        %v2505 = vpack.c.bf16 %v2501, %v2501
        %v2506 = vpack.c.bf16 %v2502, %v2502
        %v2507 = vpack.c.bf16 %v2503, %v2503
        %v2508 = vld [vmem:[#allocation14] sm:$0xff]
        %v2509 = vld [vmem:[#allocation14 + $0x8] sm:$0xff]
        %v2510 = vld [vmem:[#allocation14 + $0x10] sm:$0xff]
        %v2511 = vld [vmem:[#allocation14 + $0x18] sm:$0xff]
        %v2512 = vld [vmem:[#allocation14 + $0x20] sm:$0xff]
        %v2513 = vld [vmem:[#allocation14 + $0x28] sm:$0xff]
        %v2514 = vld [vmem:[#allocation14 + $0x30] sm:$0xff]
        %v2515 = vld [vmem:[#allocation14 + $0x38] sm:$0xff]
        %v2516 = vld [vmem:[#allocation14 + $0x40] sm:$0xff]
        %v2517 = vld [vmem:[#allocation14 + $0x48] sm:$0xff]
        %v2518 = vld [vmem:[#allocation14 + $0x50] sm:$0xff]
        %v2519 = vld [vmem:[#allocation14 + $0x58] sm:$0xff]
        %v2520 = vld [vmem:[#allocation14 + $0x60] sm:$0xff]
        %v2521 = vld [vmem:[#allocation14 + $0x68] sm:$0xff]
        %v2522 = vld [vmem:[#allocation14 + $0x70] sm:$0xff]
        %v2523 = vld [vmem:[#allocation14 + $0x78] sm:$0xff]
        %v2524 = vld [vmem:[#allocation14 + $0x80] sm:$0xff]
        %v2525 = vld [vmem:[#allocation14 + $0x88] sm:$0xff]
        %v2526 = vld [vmem:[#allocation14 + $0x90] sm:$0xff]
        %v2527 = vld [vmem:[#allocation14 + $0x98] sm:$0xff]
        %v2528 = vld [vmem:[#allocation14 + $0xa0] sm:$0xff]
        %v2529 = vld [vmem:[#allocation14 + $0xa8] sm:$0xff]
        %v2530 = vld [vmem:[#allocation14 + $0xb0] sm:$0xff]
        %v2531 = vld [vmem:[#allocation14 + $0xb8] sm:$0xff]
        %v2532 = vld [vmem:[#allocation14 + $0xc0] sm:$0xff]
        %v2533 = vld [vmem:[#allocation14 + $0xc8] sm:$0xff]
        %v2534 = vld [vmem:[#allocation14 + $0xd0] sm:$0xff]
        %v2535 = vld [vmem:[#allocation14 + $0xd8] sm:$0xff]
        %v2536 = vld [vmem:[#allocation14 + $0xe0] sm:$0xff]
        %v2537 = vld [vmem:[#allocation14 + $0xe8] sm:$0xff]
        %v2538 = vld [vmem:[#allocation14 + $0xf0] sm:$0xff]
        %v2539 = vld [vmem:[#allocation14 + $0xf8] sm:$0xff]
        %v2540 = vld [vmem:[#allocation14 + $0x100] sm:$0xff]
        %v2541 = vld [vmem:[#allocation14 + $0x108] sm:$0xff]
        %v2542 = vld [vmem:[#allocation14 + $0x110] sm:$0xff]
        %v2543 = vld [vmem:[#allocation14 + $0x118] sm:$0xff]
        %v2544 = vld [vmem:[#allocation14 + $0x120] sm:$0xff]
        %v2545 = vld [vmem:[#allocation14 + $0x128] sm:$0xff]
        %v2546 = vld [vmem:[#allocation14 + $0x130] sm:$0xff]
        %v2547 = vld [vmem:[#allocation14 + $0x138] sm:$0xff]
        %v2548 = vld [vmem:[#allocation14 + $0x140] sm:$0xff]
        %v2549 = vld [vmem:[#allocation14 + $0x148] sm:$0xff]
        %v2550 = vld [vmem:[#allocation14 + $0x150] sm:$0xff]
        %v2551 = vld [vmem:[#allocation14 + $0x158] sm:$0xff]
        %v2552 = vld [vmem:[#allocation14 + $0x160] sm:$0xff]
        %v2553 = vld [vmem:[#allocation14 + $0x168] sm:$0xff]
        %v2554 = vld [vmem:[#allocation14 + $0x170] sm:$0xff]
        %v2555 = vld [vmem:[#allocation14 + $0x178] sm:$0xff]
        %v2556 = vld [vmem:[#allocation14 + $0x180] sm:$0xff]
        %v2557 = vld [vmem:[#allocation14 + $0x188] sm:$0xff]
        %v2558 = vld [vmem:[#allocation14 + $0x190] sm:$0xff]
        %v2559 = vld [vmem:[#allocation14 + $0x198] sm:$0xff]
        %v2560 = vld [vmem:[#allocation14 + $0x1a0] sm:$0xff]
        %v2561 = vld [vmem:[#allocation14 + $0x1a8] sm:$0xff]
        %v2562 = vld [vmem:[#allocation14 + $0x1b0] sm:$0xff]
        %v2563 = vld [vmem:[#allocation14 + $0x1b8] sm:$0xff]
        %v2564 = vld [vmem:[#allocation14 + $0x1c0] sm:$0xff]
        %v2565 = vld [vmem:[#allocation14 + $0x1c8] sm:$0xff]
        %v2566 = vld [vmem:[#allocation14 + $0x1d0] sm:$0xff]
        %v2567 = vld [vmem:[#allocation14 + $0x1d8] sm:$0xff]
        %v2568 = vld [vmem:[#allocation14 + $0x1e0] sm:$0xff]
        %v2569 = vld [vmem:[#allocation14 + $0x1e8] sm:$0xff]
        %v2570 = vld [vmem:[#allocation14 + $0x1f0] sm:$0xff]
        %v2571 = vld [vmem:[#allocation14 + $0x1f8] sm:$0xff]
        %s2572 = scalar_lea.vmem %s1, 32
        %v2573 = vld [vmem:[%s2572] ss:$8 sm:$0x3]
        %v2575 = vperm.slane %v2573, 0
        %v2576 = vperm.slane %v2573, 1
        %v2643 = vunpack.c.l.b16 %v2508
        %v2644 = vunpack.c.h.b16 %v2508
        %v2645 = vunpack.c.l.b16 %v2509
        %v2646 = vunpack.c.h.b16 %v2509
        %v2647 = vunpack.c.l.b16 %v2510
        %v2648 = vunpack.c.h.b16 %v2510
        %v2649 = vunpack.c.l.b16 %v2511
        %v2650 = vunpack.c.h.b16 %v2511
        %v2651 = vunpack.c.l.b16 %v2512
        %v2652 = vunpack.c.h.b16 %v2512
        %v2653 = vunpack.c.l.b16 %v2513
        %v2654 = vunpack.c.h.b16 %v2513
        %v2655 = vunpack.c.l.b16 %v2514
        %v2656 = vunpack.c.h.b16 %v2514
        %v2657 = vunpack.c.l.b16 %v2515
        %v2658 = vunpack.c.h.b16 %v2515
        %v2659 = vunpack.c.l.b16 %v2516
        %v2660 = vunpack.c.h.b16 %v2516
        %v2661 = vunpack.c.l.b16 %v2517
        %v2662 = vunpack.c.h.b16 %v2517
        %v2663 = vunpack.c.l.b16 %v2518
        %v2664 = vunpack.c.h.b16 %v2518
        %v2665 = vunpack.c.l.b16 %v2519
        %v2666 = vunpack.c.h.b16 %v2519
        %v2667 = vunpack.c.l.b16 %v2520
        %v2668 = vunpack.c.h.b16 %v2520
        %v2669 = vunpack.c.l.b16 %v2521
        %v2670 = vunpack.c.h.b16 %v2521
        %v2671 = vunpack.c.l.b16 %v2522
        %v2672 = vunpack.c.h.b16 %v2522
        %v2673 = vunpack.c.l.b16 %v2523
        %v2674 = vunpack.c.h.b16 %v2523
        %v2675 = vunpack.c.l.b16 %v2524
        %v2676 = vunpack.c.h.b16 %v2524
        %v2677 = vunpack.c.l.b16 %v2525
        %v2678 = vunpack.c.h.b16 %v2525
        %v2679 = vunpack.c.l.b16 %v2526
        %v2680 = vunpack.c.h.b16 %v2526
        %v2681 = vunpack.c.l.b16 %v2527
        %v2682 = vunpack.c.h.b16 %v2527
        %v2683 = vunpack.c.l.b16 %v2528
        %v2684 = vunpack.c.h.b16 %v2528
        %v2685 = vunpack.c.l.b16 %v2529
        %v2686 = vunpack.c.h.b16 %v2529
        %v2687 = vunpack.c.l.b16 %v2530
        %v2688 = vunpack.c.h.b16 %v2530
        %v2689 = vunpack.c.l.b16 %v2531
        %v2690 = vunpack.c.h.b16 %v2531
        %v2691 = vunpack.c.l.b16 %v2532
        %v2692 = vunpack.c.h.b16 %v2532
        %v2693 = vunpack.c.l.b16 %v2533
        %v2694 = vunpack.c.h.b16 %v2533
        %v2695 = vunpack.c.l.b16 %v2534
        %v2696 = vunpack.c.h.b16 %v2534
        %v2697 = vunpack.c.l.b16 %v2535
        %v2698 = vunpack.c.h.b16 %v2535
        %v2699 = vunpack.c.l.b16 %v2536
        %v2700 = vunpack.c.h.b16 %v2536
        %v2701 = vunpack.c.l.b16 %v2537
        %v2702 = vunpack.c.h.b16 %v2537
        %v2703 = vunpack.c.l.b16 %v2538
        %v2704 = vunpack.c.h.b16 %v2538
        %v2705 = vunpack.c.l.b16 %v2539
        %v2706 = vunpack.c.h.b16 %v2539
        %v2707 = vunpack.c.l.b16 %v2540
        %v2708 = vunpack.c.h.b16 %v2540
        %v2709 = vunpack.c.l.b16 %v2541
        %v2710 = vunpack.c.h.b16 %v2541
        %v2711 = vunpack.c.l.b16 %v2542
        %v2712 = vunpack.c.h.b16 %v2542
        %v2713 = vunpack.c.l.b16 %v2543
        %v2714 = vunpack.c.h.b16 %v2543
        %v2715 = vunpack.c.l.b16 %v2544
        %v2716 = vunpack.c.h.b16 %v2544
        %v2717 = vunpack.c.l.b16 %v2545
        %v2718 = vunpack.c.h.b16 %v2545
        %v2719 = vunpack.c.l.b16 %v2546
        %v2720 = vunpack.c.h.b16 %v2546
        %v2721 = vunpack.c.l.b16 %v2547
        %v2722 = vunpack.c.h.b16 %v2547
        %v2723 = vunpack.c.l.b16 %v2548
        %v2724 = vunpack.c.h.b16 %v2548
        %v2725 = vunpack.c.l.b16 %v2549
        %v2726 = vunpack.c.h.b16 %v2549
        %v2727 = vunpack.c.l.b16 %v2550
        %v2728 = vunpack.c.h.b16 %v2550
        %v2729 = vunpack.c.l.b16 %v2551
        %v2730 = vunpack.c.h.b16 %v2551
        %v2731 = vunpack.c.l.b16 %v2552
        %v2732 = vunpack.c.h.b16 %v2552
        %v2733 = vunpack.c.l.b16 %v2553
        %v2734 = vunpack.c.h.b16 %v2553
        %v2735 = vunpack.c.l.b16 %v2554
        %v2736 = vunpack.c.h.b16 %v2554
        %v2737 = vunpack.c.l.b16 %v2555
        %v2738 = vunpack.c.h.b16 %v2555
        %v2739 = vunpack.c.l.b16 %v2556
        %v2740 = vunpack.c.h.b16 %v2556
        %v2741 = vunpack.c.l.b16 %v2557
        %v2742 = vunpack.c.h.b16 %v2557
        %v2743 = vunpack.c.l.b16 %v2558
        %v2744 = vunpack.c.h.b16 %v2558
        %v2745 = vunpack.c.l.b16 %v2559
        %v2746 = vunpack.c.h.b16 %v2559
        %v2747 = vunpack.c.l.b16 %v2560
        %v2748 = vunpack.c.h.b16 %v2560
        %v2749 = vunpack.c.l.b16 %v2561
        %v2750 = vunpack.c.h.b16 %v2561
        %v2751 = vunpack.c.l.b16 %v2562
        %v2752 = vunpack.c.h.b16 %v2562
        %v2753 = vunpack.c.l.b16 %v2563
        %v2754 = vunpack.c.h.b16 %v2563
        %v2755 = vunpack.c.l.b16 %v2564
        %v2756 = vunpack.c.h.b16 %v2564
        %v2757 = vunpack.c.l.b16 %v2565
        %v2758 = vunpack.c.h.b16 %v2565
        %v2759 = vunpack.c.l.b16 %v2566
        %v2760 = vunpack.c.h.b16 %v2566
        %v2761 = vunpack.c.l.b16 %v2567
        %v2762 = vunpack.c.h.b16 %v2567
        %v2763 = vunpack.c.l.b16 %v2568
        %v2764 = vunpack.c.h.b16 %v2568
        %v2765 = vunpack.c.l.b16 %v2569
        %v2766 = vunpack.c.h.b16 %v2569
        %v2767 = vunpack.c.l.b16 %v2570
        %v2768 = vunpack.c.h.b16 %v2570
        %v2769 = vunpack.c.l.b16 %v2571
        %v2770 = vunpack.c.h.b16 %v2571
        %v2771 = vpack.c.b16 %v2645, %v2643
        %v2772 = vpack.c.b16 %v2646, %v2644
        %v2773 = vpack.c.b16 %v2649, %v2647
        %v2774 = vpack.c.b16 %v2650, %v2648
        %v2775 = vpack.c.b16 %v2653, %v2651
        %v2776 = vpack.c.b16 %v2654, %v2652
        %v2777 = vpack.c.b16 %v2657, %v2655
        %v2778 = vpack.c.b16 %v2658, %v2656
        %v2779 = vpack.c.b16 %v2661, %v2659
        %v2780 = vpack.c.b16 %v2662, %v2660
        %v2781 = vpack.c.b16 %v2665, %v2663
        %v2782 = vpack.c.b16 %v2666, %v2664
        %v2783 = vpack.c.b16 %v2669, %v2667
        %v2784 = vpack.c.b16 %v2670, %v2668
        %v2785 = vpack.c.b16 %v2673, %v2671
        %v2786 = vpack.c.b16 %v2674, %v2672
        %v2787 = vpack.c.b16 %v2677, %v2675
        %v2788 = vpack.c.b16 %v2678, %v2676
        %v2789 = vpack.c.b16 %v2681, %v2679
        %v2790 = vpack.c.b16 %v2682, %v2680
        %v2791 = vpack.c.b16 %v2685, %v2683
        %v2792 = vpack.c.b16 %v2686, %v2684
        %v2793 = vpack.c.b16 %v2689, %v2687
        %v2794 = vpack.c.b16 %v2690, %v2688
        %v2795 = vpack.c.b16 %v2693, %v2691
        %v2796 = vpack.c.b16 %v2694, %v2692
        %v2797 = vpack.c.b16 %v2697, %v2695
        %v2798 = vpack.c.b16 %v2698, %v2696
        %v2799 = vpack.c.b16 %v2701, %v2699
        %v2800 = vpack.c.b16 %v2702, %v2700
        %v2801 = vpack.c.b16 %v2705, %v2703
        %v2802 = vpack.c.b16 %v2706, %v2704
        %v2803 = vpack.c.b16 %v2709, %v2707
        %v2804 = vpack.c.b16 %v2710, %v2708
        %v2805 = vpack.c.b16 %v2713, %v2711
        %v2806 = vpack.c.b16 %v2714, %v2712
        %v2807 = vpack.c.b16 %v2717, %v2715
        %v2808 = vpack.c.b16 %v2718, %v2716
        %v2809 = vpack.c.b16 %v2721, %v2719
        %v2810 = vpack.c.b16 %v2722, %v2720
        %v2811 = vpack.c.b16 %v2725, %v2723
        %v2812 = vpack.c.b16 %v2726, %v2724
        %v2813 = vpack.c.b16 %v2729, %v2727
        %v2814 = vpack.c.b16 %v2730, %v2728
        %v2815 = vpack.c.b16 %v2733, %v2731
        %v2816 = vpack.c.b16 %v2734, %v2732
        %v2817 = vpack.c.b16 %v2737, %v2735
        %v2818 = vpack.c.b16 %v2738, %v2736
        %v2819 = vpack.c.b16 %v2741, %v2739
        %v2820 = vpack.c.b16 %v2742, %v2740
        %v2821 = vpack.c.b16 %v2745, %v2743
        %v2822 = vpack.c.b16 %v2746, %v2744
        %v2823 = vpack.c.b16 %v2749, %v2747
        %v2824 = vpack.c.b16 %v2750, %v2748
        %v2825 = vpack.c.b16 %v2753, %v2751
        %v2826 = vpack.c.b16 %v2754, %v2752
        %v2827 = vpack.c.b16 %v2757, %v2755
        %v2828 = vpack.c.b16 %v2758, %v2756
        %v2829 = vpack.c.b16 %v2761, %v2759
        %v2830 = vpack.c.b16 %v2762, %v2760
        %v2831 = vpack.c.b16 %v2765, %v2763
        %v2832 = vpack.c.b16 %v2766, %v2764
        %v2833 = vpack.c.b16 %v2769, %v2767
        %v2834 = vpack.c.b16 %v2770, %v2768
        %2899 = vmatpush.bf16.msra.mxu0 %v2785
        %2900 = vmatpush.bf16.msra.mxu0 %v2783
        %2901 = vmatpush.bf16.msra.mxu0 %v2781
        %2902 = vmatpush.bf16.msra.mxu0 %v2779
        %2903 = vmatpush.bf16.msra.mxu0 %v2777
        %2904 = vmatpush.bf16.msra.mxu0 %v2775
        %2905 = vmatpush.bf16.msra.mxu0 %v2773
        %2906 = vmatpush.bf16.msra.mxu0 %v2771
        %2907 = vmatmul.bf16.gmra.mxu0 %v2504
        %v2908 = vpop.f32.mrf.mxu0
        %v2909 = vadd.f32 %v2575, %v2908
        %v2910 = vpop.f32.mrf.mxu0
        %2911 = vdwg.mxu0
        %2912 = vmatpush.bf16.msra.mxu0 %v2801
        %2913 = vmatpush.bf16.msra.mxu0 %v2799
        %2914 = vmatpush.bf16.msra.mxu0 %v2797
        %2915 = vmatpush.bf16.msra.mxu0 %v2795
        %2916 = vmatpush.bf16.msra.mxu0 %v2793
        %2917 = vmatpush.bf16.msra.mxu0 %v2791
        %2918 = vmatpush.bf16.msra.mxu0 %v2789
        %2919 = vmatpush.bf16.msra.mxu0 %v2787
        %2920 = vmatmul.bf16.gmra.mxu0 %v2505
        %v2921 = vpop.f32.mrf.mxu0
        %v2922 = vadd.f32 %v2909, %v2921
        %v2923 = vpop.f32.mrf.mxu0
        %2924 = vdwg.mxu0
        %2925 = vmatpush.bf16.msra.mxu0 %v2817
        %2926 = vmatpush.bf16.msra.mxu0 %v2815
        %2927 = vmatpush.bf16.msra.mxu0 %v2813
        %2928 = vmatpush.bf16.msra.mxu0 %v2811
        %2929 = vmatpush.bf16.msra.mxu0 %v2809
        %2930 = vmatpush.bf16.msra.mxu0 %v2807
        %2931 = vmatpush.bf16.msra.mxu0 %v2805
        %2932 = vmatpush.bf16.msra.mxu0 %v2803
        %2933 = vmatmul.bf16.gmra.mxu0 %v2506
        %v2934 = vpop.f32.mrf.mxu0
        %v2935 = vadd.f32 %v2922, %v2934
        %v2936 = vpop.f32.mrf.mxu0
        %2937 = vdwg.mxu0
        %2938 = vmatpush.bf16.msra.mxu0 %v2833
        %2939 = vmatpush.bf16.msra.mxu0 %v2831
        %2940 = vmatpush.bf16.msra.mxu0 %v2829
        %2941 = vmatpush.bf16.msra.mxu0 %v2827
        %2942 = vmatpush.bf16.msra.mxu0 %v2825
        %2943 = vmatpush.bf16.msra.mxu0 %v2823
        %2944 = vmatpush.bf16.msra.mxu0 %v2821
        %2945 = vmatpush.bf16.msra.mxu0 %v2819
        %2946 = vmatmul.bf16.gmra.mxu0 %v2507
        %v2947 = vpop.f32.mrf.mxu0
        %v2948 = vadd.f32 %v2935, %v2947
        %v2949 = vpop.f32.mrf.mxu0
        %2950 = vdwg.mxu0
        %2951 = vmatpush.bf16.msra.mxu0 %v2786
        %2952 = vmatpush.bf16.msra.mxu0 %v2784
        %2953 = vmatpush.bf16.msra.mxu0 %v2782
        %2954 = vmatpush.bf16.msra.mxu0 %v2780
        %2955 = vmatpush.bf16.msra.mxu0 %v2778
        %2956 = vmatpush.bf16.msra.mxu0 %v2776
        %2957 = vmatpush.bf16.msra.mxu0 %v2774
        %2958 = vmatpush.bf16.msra.mxu0 %v2772
        %2959 = vmatmul.bf16.gmra.mxu0 %v2504
        %v2960 = vpop.f32.mrf.mxu0
        %v2961 = vadd.f32 %v2576, %v2960
        %v2962 = vpop.f32.mrf.mxu0
        %2963 = vdwg.mxu0
        %2964 = vmatpush.bf16.msra.mxu0 %v2802
        %2965 = vmatpush.bf16.msra.mxu0 %v2800
        %2966 = vmatpush.bf16.msra.mxu0 %v2798
        %2967 = vmatpush.bf16.msra.mxu0 %v2796
        %2968 = vmatpush.bf16.msra.mxu0 %v2794
        %2969 = vmatpush.bf16.msra.mxu0 %v2792
        %2970 = vmatpush.bf16.msra.mxu0 %v2790
        %2971 = vmatpush.bf16.msra.mxu0 %v2788
        %2972 = vmatmul.bf16.gmra.mxu0 %v2505
        %v2973 = vpop.f32.mrf.mxu0
        %v2974 = vadd.f32 %v2961, %v2973
        %v2975 = vpop.f32.mrf.mxu0
        %2976 = vdwg.mxu0
        %2977 = vmatpush.bf16.msra.mxu0 %v2818
        %2978 = vmatpush.bf16.msra.mxu0 %v2816
        %2979 = vmatpush.bf16.msra.mxu0 %v2814
        %2980 = vmatpush.bf16.msra.mxu0 %v2812
        %2981 = vmatpush.bf16.msra.mxu0 %v2810
        %2982 = vmatpush.bf16.msra.mxu0 %v2808
        %2983 = vmatpush.bf16.msra.mxu0 %v2806
        %2984 = vmatpush.bf16.msra.mxu0 %v2804
        %2985 = vmatmul.bf16.gmra.mxu0 %v2506
        %v2986 = vpop.f32.mrf.mxu0
        %v2987 = vadd.f32 %v2974, %v2986
        %v2988 = vpop.f32.mrf.mxu0
        %2989 = vdwg.mxu0
        %2990 = vmatpush.bf16.msra.mxu0 %v2834
        %2991 = vmatpush.bf16.msra.mxu0 %v2832
        %2992 = vmatpush.bf16.msra.mxu0 %v2830
        %2993 = vmatpush.bf16.msra.mxu0 %v2828
        %2994 = vmatpush.bf16.msra.mxu0 %v2826
        %2995 = vmatpush.bf16.msra.mxu0 %v2824
        %2996 = vmatpush.bf16.msra.mxu0 %v2822
        %2997 = vmatpush.bf16.msra.mxu0 %v2820
        %2998 = vmatmul.bf16.gmra.mxu0 %v2507
        %v2999 = vpop.f32.mrf.mxu0
        %v3000 = vadd.f32 %v2987, %v2999
        %v3001 = vpop.f32.mrf.mxu0
        %3002 = vdwg.mxu0
        %3003 = vst [vmem:[%s512] sm:$0xff] %v2948
        %3004 = vst [vmem:[%s512 + $0x8] sm:$0xff] %v3000
        %s3005 = sand.u32 %s274, 1
        %s3006 = scalar_lea.sflag [#allocation4], %s3005
        %s3007 = sand.u32 %s274, 1
        %s3008 = smul.addr %s3007, 16
        %s3009 = scalar_lea.vmem [#allocation16], %s3008
        // Predicated region
        $region97: #{tpu_custom_call.1} parent=63 // pred_check
          %p3010 = pneg %p284
        $region98: #{tpu_custom_call.1} parent=63 // pred_check_branch
          %3012 = sbr.rel (%p3010) target = $region100
        $region99: #{tpu_custom_call.1} parent=63 // pred_region
          %3014 = vsyncadd %s3006, 0
          %s3015 = smul.addr %s30, 2
          %s3016 = smul.addr %s3015, 8
          %s3017 = scalar_lea.hbm %s11, %s3016
          %s3019 = sshll.u32 %s3009, 4
          %s3020 = int_to_ptr.vmem [resolvable:$true] %s3019
          %s3021 = sshll.u32 %s3017, 4
          %s3022 = int_to_ptr.hbm [resolvable:$true] %s3021
          %3024 = dma.vmem_to_hbm [thread:$0]  %s3020, 256, %s3022, %s3006
        $region100: #{tpu_custom_call.1} parent=63 // pred_fallthru
          _
      $region64: #{tpu_custom_call.1} parent=5 // pred_fallthru
        _
      %p3025 = scmp.le.s32.totalorder 2, %s25
      // Predicated region
      $region101: #{tpu_custom_call.1} parent=5 // pred_check
        %p3026 = pneg %p3025
      $region102: #{tpu_custom_call.1} parent=5 // pred_check_branch
        %3028 = sbr.rel (%p3026) target = $region104
      $region103: #{tpu_custom_call.1} parent=5 // pred_region
        %s3029 = ssub.s32 %s25, 2
        // Predicated region
        $region105: #{tpu_custom_call.1} parent=103 // pred_check
          %p3030 = pneg %p290
        $region106: #{tpu_custom_call.1} parent=103 // pred_check_branch
          %3032 = sbr.rel (%p3030) target = $region108
        $region107: #{tpu_custom_call.1} parent=103 // pred_region
          %s3033 = sand.u32 %s275, 1
          %s3034 = scalar_lea.sflag [#allocation4], %s3033
          %s3035 = sand.u32 %s275, 1
          %s3036 = smul.addr %s3035, 16
          %s3037 = scalar_lea.vmem [#allocation16], %s3036
          %3039 = dma.done %s3034, 256
        $region108: #{tpu_custom_call.1} parent=103 // pred_fallthru
          _
      $region104: #{tpu_custom_call.1} parent=5 // pred_fallthru
        _
    $region6: #{tpu_custom_call.1} parent=1 // loop_footer
      %s29 = sadd.s32 1, %s25
    $region7: #{tpu_custom_call.1} parent=1 // loop_footer_branch
      %24 = sbr.rel target = $region3
    $region8: #{tpu_custom_call.1} parent=1 // loop_exit
      _
    %3040 = vsyncpa [#allocation3], 1
    %s3041 = scalar_lea.sflag [#allocation3], 1
    %3042 = vsyncpa %s3041, 1
    %3043 = vsyncpa [#allocation6], 1
    %3044 = vsyncpa [#allocation9], 1
    %3045 = vsyncpa [#allocation12], 1
    %3046 = vsyncpa [#allocation15], 1
    %3047 = vsyncpa [#allocation4], 1
    %s3048 = scalar_lea.sflag [#allocation4], 1
    %3049 = vsyncpa %s3048, 1

</llo_original>
